<compile_context>
chip_gen: v6e
topology: v6e:2x2x1
jax: 0.10.0
libtpu: 0.0.40
codegen_flags: <defaults>
</compile_context>

<pallas_src>
import functools

import jax
import jax.numpy as jnp
from jax.experimental import pallas as pl
from jax.experimental.pallas import tpu as pltpu

LANE = 128


def _round_up(n, m):
    return ((n + m - 1) // m) * m


def _pad2d(a, rows, cols, dtype):
    a = a.astype(dtype)
    return jnp.pad(a, ((0, rows - a.shape[0]), (0, cols - a.shape[1])))


def _degree_norms(adj):
    """DGL GraphConv norm='both': clamp(deg, min=1)^-0.5 for src/dst of a block."""
    adj = adj.astype(jnp.float32)
    d_src = jnp.clip(jnp.sum(adj, axis=0), 1.0, None) ** -0.5   # src out-degree
    d_dst = jnp.clip(jnp.sum(adj, axis=1), 1.0, None) ** -0.5   # dst in-degree
    return d_src, d_dst


def _vmem_bytes(shape, dtype):
    """Approx. VMEM footprint of a 2-D buffer in the native tiled layout."""
    item = jnp.dtype(dtype).itemsize
    sub = 8 * max(1, 4 // item)          # f32: 8, bf16: 16, int8: 32 rows/tile
    rows, cols = shape
    return _round_up(max(rows, 1), sub) * _round_up(max(cols, 1), LANE) * item


# ------------------------------- kernel ------------------------------------

def gcn_fused_kernel(adj0_ref, x_ref, dsrc0_ref, w1_ref, b1_ref, ddst0_ref,
                     adj1_ref, dsrc1_ref, w2_ref, b2_ref, ddst1_ref,
                     o_ref, xw_cache, acc_h, acc_out, *, tile_h, tile_k):
    i = pl.program_id(0)           # layer-1 dst-row tile (== layer-2 src tile)
    k = pl.program_id(1)           # layer-1 src tile (reduction, innermost)
    ni = pl.num_programs(0)
    nk = pl.num_programs(1)

    i_off = pl.multiple_of(i * tile_h, tile_h)
    k_off = pl.multiple_of(k * tile_k, tile_k)

    # ---- Layer-1 projection, computed once (i == 0) and cached in VMEM. ----
    #   xw_cache[k] = (X[k] @ W1) * d_src0^-1/2[k]   (zero-padded rows stay 0)
    @pl.when(i == 0)
    def _():
        xw = jnp.dot(x_ref[pl.ds(k_off, tile_k), :], w1_ref[...],
                     preferred_element_type=jnp.float32)
        xw_cache[pl.ds(k_off, tile_k), :] = (
            xw * dsrc0_ref[pl.ds(k_off, tile_k), :]).astype(jnp.bfloat16)

    @pl.when(k == 0)
    def _():
        acc_h[...] = jnp.zeros_like(acc_h)

    # ---- Layer-1 aggregation partial on the streamed adjacency tile. -------
    a0 = adj0_ref[...].astype(jnp.float32).astype(jnp.bfloat16)  # int8 0/1 exact
    acc_h[...] += jnp.dot(a0, xw_cache[pl.ds(k_off, tile_k), :],
                          preferred_element_type=jnp.float32)

    # ---- Last k step: finalize this h tile, add its layer-2 partial. -------
    @pl.when(k == nk - 1)
    def _():
        h = jnp.maximum(
            acc_h[...] * ddst0_ref[pl.ds(i_off, tile_h), :] + b1_ref[...], 0.0)
        hw = jnp.dot(h.astype(jnp.bfloat16), w2_ref[...],
                     preferred_element_type=jnp.float32)
        # d_src1 is zero-padded -> padded h rows contribute exactly zero.
        hw_s = (hw * dsrc1_ref[pl.ds(i_off, tile_h), :]).astype(jnp.bfloat16)
        a1 = adj1_ref[...].astype(jnp.float32).astype(jnp.bfloat16)
        part = jnp.dot(a1, hw_s, preferred_element_type=jnp.float32)

        @pl.when(i == 0)
        def _():
            acc_out[...] = jnp.zeros_like(acc_out)

        acc_out[...] += part

        @pl.when(i == ni - 1)
        def _():
            o_ref[...] = (acc_out[...] * ddst1_ref[...] + b2_ref[...]
                          ).astype(o_ref.dtype)


# ----------------------------- wrapper / glue ------------------------------

@functools.partial(jax.jit, static_argnames=("tile_h", "tile_k"))
def gcn_forward(adj_blocks, features, params, *, tile_h=128, tile_k=128):
    """Matches GCN.forward(blocks, features):
         x = relu(conv1(blocks[0], features)); x = conv2(blocks[1], x)
       Blocks are given as dense 0/1 bipartite adjacencies [N_dst, N_src]."""
    adj0, adj1 = adj_blocks
    w1, b1, w2, b2 = params

    n_dst0, n_src0 = adj0.shape
    n_dst1, n_src1 = adj1.shape
    assert n_src1 == n_dst0, "block 1 src nodes must be block 0 dst nodes"
    f_in, h_feats = w1.shape
    n_cls = w2.shape[1]

    # NOTE: 256/512-wide tiles feed the v6e 256-wide MXU better; 128 keeps
    # padding waste low at small block sizes.
    tile_k = min(tile_k, _round_up(n_src0, LANE))
    tile_h = min(tile_h, _round_up(n_dst0, LANE))

    # Padding: contraction/node dims -> multiples of the 128-wide tiles,
    # output rows -> multiple of 32 (int8/bf16 sublane packing),
    # feature dims -> 128 lanes.
    n0 = _round_up(n_src0, tile_k)
    n1 = _round_up(n_dst0, tile_h)
    n2 = _round_up(n_dst1, 32)
    fi = _round_up(f_in, LANE)
    fh = _round_up(h_feats, LANE)
    fo = _round_up(n_cls, LANE)
    ni, nk = n1 // tile_h, n0 // tile_k

    d_src0, d_dst0 = _degree_norms(adj0)
    d_src1, d_dst1 = _degree_norms(adj1)

    # int8 adjacency in HBM (half the bytes of bf16); bf16 MXU operands;
    # f32 degree scales + biases for the epilogue.
    adj0_p = _pad2d(adj0, n1, n0, jnp.int8)
    adj1_p = _pad2d(adj1, n2, n1, jnp.int8)
    x_p = _pad2d(features, n0, fi, jnp.bfloat16)
    w1_p = _pad2d(w1, fi, fh, jnp.bfloat16)
    w2_p = _pad2d(w2, fh, fo, jnp.bfloat16)
    b1_p = _pad2d(b1.reshape(1, -1), 1, fh, jnp.float32)
    b2_p = _pad2d(b2.reshape(1, -1), 1, fo, jnp.float32)
    dsrc0_p = _pad2d(d_src0.reshape(-1, 1), n0, 1, jnp.float32)
    ddst0_p = _pad2d(d_dst0.reshape(-1, 1), n1, 1, jnp.float32)
    dsrc1_p = _pad2d(d_src1.reshape(-1, 1), n1, 1, jnp.float32)
    ddst1_p = _pad2d(d_dst1.reshape(-1, 1), n2, 1, jnp.float32)

    # VMEM budget: streamed adj tiles + resident operands (x2 pipeline bufs)
    # + scratch, plus headroom for compiler internals.
    resident = (
        2 * _vmem_bytes((tile_h, tile_k), jnp.int8)         # adj0 tile
        + 2 * _vmem_bytes((n2, tile_h), jnp.int8)           # adj1 column tile
        + 2 * (_vmem_bytes((n0, fi), jnp.bfloat16)          # x (resident)
               + _vmem_bytes((n0, 1), jnp.float32)
               + _vmem_bytes((fi, fh), jnp.bfloat16)
               + _vmem_bytes((1, fh), jnp.float32)
               + 2 * _vmem_bytes((n1, 1), jnp.float32)
               + _vmem_bytes((fh, fo), jnp.bfloat16)
               + _vmem_bytes((1, fo), jnp.float32)
               + _vmem_bytes((n2, 1), jnp.float32)
               + _vmem_bytes((n2, fo), jnp.bfloat16))       # output
        + _vmem_bytes((n0, fh), jnp.bfloat16)               # xw_cache scratch
        + _vmem_bytes((tile_h, fh), jnp.float32)            # acc_h scratch
        + _vmem_bytes((n2, fo), jnp.float32))               # acc_out scratch
    vmem_limit = int(min(max(resident + (8 << 20), 32 << 20), 100 << 20))

    flops = 2 * (n0 * fi * fh + n1 * n0 * fh + n1 * fh * fo + n2 * n1 * fo)
    bytes_accessed = int(adj0_p.size + adj1_p.size
                         + 2 * (x_p.size + w1_p.size + w2_p.size + n2 * fo)
                         + 4 * (n0 + 2 * n1 + n2 + fh + fo))
    cost = pl.CostEstimate(flops=flops, transcendentals=0,
                           bytes_accessed=bytes_accessed)

    kernel = functools.partial(gcn_fused_kernel, tile_h=tile_h, tile_k=tile_k)

    grid_spec = pltpu.PrefetchScalarGridSpec(
        num_scalar_prefetch=0,
        grid=(ni, nk),                        # layer-1 reduction axis innermost
        in_specs=[
            pl.BlockSpec((tile_h, tile_k), lambda i, k: (i, k)),   # adj0 tile
            pl.BlockSpec((n0, fi), lambda i, k: (0, 0)),           # x (resident)
            pl.BlockSpec((n0, 1), lambda i, k: (0, 0)),            # d_src0
            pl.BlockSpec((fi, fh), lambda i, k: (0, 0)),           # w1
            pl.BlockSpec((1, fh), lambda i, k: (0, 0)),            # b1
            pl.BlockSpec((n1, 1), lambda i, k: (0, 0)),            # d_dst0
            pl.BlockSpec((n2, tile_h), lambda i, k: (0, i)),       # adj1 col tile
            pl.BlockSpec((n1, 1), lambda i, k: (0, 0)),            # d_src1
            pl.BlockSpec((fh, fo), lambda i, k: (0, 0)),           # w2
            pl.BlockSpec((1, fo), lambda i, k: (0, 0)),            # b2
            pl.BlockSpec((n2, 1), lambda i, k: (0, 0)),            # d_dst1
        ],
        out_specs=pl.BlockSpec((n2, fo), lambda i, k: (0, 0)),
        scratch_shapes=[
            pltpu.VMEM((n0, fh), jnp.bfloat16),     # cached (X@W1)*d_src0
            pltpu.VMEM((tile_h, fh), jnp.float32),  # layer-1 accumulator
            pltpu.VMEM((n2, fo), jnp.float32),      # layer-2 accumulator
        ],
    )

    out_p = pl.pallas_call(
        kernel,
        out_shape=jax.ShapeDtypeStruct((n2, fo), jnp.bfloat16),
        grid_spec=grid_spec,
        compiler_params=pltpu.CompilerParams(
            # Both grid axes reduce into the resident output -> "arbitrary".
            dimension_semantics=("arbitrary", "arbitrary"),
            vmem_limit_bytes=vmem_limit),
        cost_estimate=cost,
    )(adj0_p, x_p, dsrc0_p, w1_p, b1_p, ddst0_p,
      adj1_p, dsrc1_p, w2_p, b2_p, ddst1_p)

    return out_p[:n_dst1, :n_cls].astype(jnp.float32)


if __name__ == "__main__":
    in_feats, h_feats, num_classes = 16, 32, 7
    n_src0, n_dst0 = 300, 200          # block 0: 300 src -> 200 dst nodes
    n_src1, n_dst1 = n_dst0, 96        # block 1: 200 src ->  96 dst nodes

    key = jax.random.PRNGKey(0)
    k_feat, k_a0, k_a1, k_w1, k_w2, k_b1, k_b2 = jax.random.split(key, 7)

    # Deterministic synthetic inputs (stand-in for the DGL blocks + features).
    features = jax.random.normal(k_feat, (n_src0, in_feats), dtype=jnp.float32)
    adj0 = (jax.random.uniform(k_a0, (n_dst0, n_src0)) < 0.05).astype(jnp.float32)
    adj1 = (jax.random.uniform(k_a1, (n_dst1, n_src1)) < 0.05).astype(jnp.float32)

    # Deterministic parameters (GraphConv: weight [F_in, F_out], bias [F_out]).
    w1 = jax.random.normal(k_w1, (in_feats, h_feats), jnp.float32) * (in_feats ** -0.5)
    b1 = 0.1 * jax.random.normal(k_b1, (h_feats,), jnp.float32)
    w2 = jax.random.normal(k_w2, (h_feats, num_classes), jnp.float32) * (h_feats ** -0.5)
    b2 = 0.1 * jax.random.normal(k_b2, (num_classes,), jnp.float32)
    params = (w1, b1, w2, b2)

    out = gcn_forward((adj0, adj1), features, params)
    jax.block_until_ready(out)

    # Plain-JAX f32 reference (explicit normalized dense adjacency path).
    def norm_adj(a):
        a = a.astype(jnp.float32)
        ds = jnp.clip(a.sum(0), 1.0, None) ** -0.5
        dd = jnp.clip(a.sum(1), 1.0, None) ** -0.5
        return a * dd[:, None] * ds[None, :]

    a_hat0, a_hat1 = norm_adj(adj0), norm_adj(adj1)
    ref_h = jnp.maximum(a_hat0 @ (features @ w1) + b1[None, :], 0.0)
    ref_out = a_hat1 @ (ref_h @ w2) + b2[None, :]

    assert out.shape == (n_dst1, num_classes)
    # bf16 MXU operands / bf16 output (f32 accumulation) -> relaxed tolerance.
    err = float(jnp.max(jnp.abs(out - ref_out)))
    assert jnp.allclose(out, ref_out, atol=1e-1, rtol=1e-1), err

    print("KERNEL_OK")
</pallas_src>

<mosaic_0001>
module attributes {stable_mosaic.version = 11 : i64} {
  func.func @gcn_fused_kernel(%arg0: i32, %arg1: i32, %arg2: memref<128x128xi8, #tpu.memory_space<vmem>>, %arg3: memref<384x128xbf16, #tpu.memory_space<vmem>>, %arg4: memref<384x1xf32, #tpu.memory_space<vmem>>, %arg5: memref<128x128xbf16, #tpu.memory_space<vmem>>, %arg6: memref<1x128xf32, #tpu.memory_space<vmem>>, %arg7: memref<256x1xf32, #tpu.memory_space<vmem>>, %arg8: memref<96x128xi8, #tpu.memory_space<vmem>>, %arg9: memref<256x1xf32, #tpu.memory_space<vmem>>, %arg10: memref<128x128xbf16, #tpu.memory_space<vmem>>, %arg11: memref<1x128xf32, #tpu.memory_space<vmem>>, %arg12: memref<96x1xf32, #tpu.memory_space<vmem>>, %arg13: memref<96x128xbf16, #tpu.memory_space<vmem>>, %arg14: memref<384x128xbf16, #tpu.memory_space<vmem>>, %arg15: memref<128x128xf32, #tpu.memory_space<vmem>>, %arg16: memref<96x128xf32, #tpu.memory_space<vmem>>) attributes {dimension_semantics = [#tpu.dimension_semantics<arbitrary>, #tpu.dimension_semantics<arbitrary>], iteration_bounds = array<i64: 2, 3>, scalar_prefetch = 0 : i64, scratch_operands = 3 : i64, tpu.core_type = #tpu.core_type<tc>, window_params = [{transform_indices = @transform_0, window_bounds = array<i64: 128, 128>}, {pipeline_mode = #tpu.pipeline_mode<synchronous>, transform_indices = @transform_1, window_bounds = array<i64: 384, 128>}, {pipeline_mode = #tpu.pipeline_mode<synchronous>, transform_indices = @transform_2, window_bounds = array<i64: 384, 1>}, {pipeline_mode = #tpu.pipeline_mode<synchronous>, transform_indices = @transform_3, window_bounds = array<i64: 128, 128>}, {pipeline_mode = #tpu.pipeline_mode<synchronous>, transform_indices = @transform_4, window_bounds = array<i64: 1, 128>}, {pipeline_mode = #tpu.pipeline_mode<synchronous>, transform_indices = @transform_5, window_bounds = array<i64: 256, 1>}, {transform_indices = @transform_6, window_bounds = array<i64: 96, 128>}, {pipeline_mode = #tpu.pipeline_mode<synchronous>, transform_indices = @transform_7, window_bounds = array<i64: 256, 1>}, {pipeline_mode = #tpu.pipeline_mode<synchronous>, transform_indices = @transform_8, window_bounds = array<i64: 128, 128>}, {pipeline_mode = #tpu.pipeline_mode<synchronous>, transform_indices = @transform_9, window_bounds = array<i64: 1, 128>}, {pipeline_mode = #tpu.pipeline_mode<synchronous>, transform_indices = @transform_10, window_bounds = array<i64: 96, 1>}, {pipeline_mode = #tpu.pipeline_mode<synchronous>, transform_indices = @transform_11, window_bounds = array<i64: 96, 128>}]} {
    %c128_i32 = arith.constant 128 : i32
    %0 = arith.muli %arg0, %c128_i32 : i32
    %1 = tpu.assume_multiple %0, 128 : i32
    %c128_i32_0 = arith.constant 128 : i32
    %2 = arith.muli %arg1, %c128_i32_0 : i32
    %3 = tpu.assume_multiple %2, 128 : i32
    %c0_i32 = arith.constant 0 : i32
    %4 = arith.cmpi eq, %arg0, %c0_i32 : i32
    %5 = arith.extui %4 : i1 to i32
    %c0_i32_1 = arith.constant 0 : i32
    %6 = arith.cmpi ne, %5, %c0_i32_1 : i32
    scf.if %6 {
      %22 = arith.index_cast %3 : i32 to index
      %c0_11 = arith.constant 0 : index
      %23 = vector.load %arg3[%22, %c0_11] : memref<384x128xbf16, #tpu.memory_space<vmem>>, vector<128x128xbf16>
      %c0_12 = arith.constant 0 : index
      %c0_13 = arith.constant 0 : index
      %24 = vector.load %arg5[%c0_12, %c0_13] : memref<128x128xbf16, #tpu.memory_space<vmem>>, vector<128x128xbf16>
      %cst_14 = arith.constant dense<0.000000e+00> : vector<128x128xf32>
      %25 = tpu.matmul %23, %24, %cst_14 {dimension_numbers = #tpu.dot_dimension_numbers<[1], [0], [0], [1], [0, 0, 1, 1], [], []>} : vector<128x128xbf16>, vector<128x128xbf16>, vector<128x128xf32> -> vector<128x128xf32>
      %26 = arith.index_cast %3 : i32 to index
      %c0_15 = arith.constant 0 : index
      %27 = vector.load %arg4[%26, %c0_15] : memref<384x1xf32, #tpu.memory_space<vmem>>, vector<128x1xf32>
      %28 = vector.broadcast %27 : vector<128x1xf32> to vector<128x128xf32>
      %29 = arith.mulf %25, %28 : vector<128x128xf32>
      %30 = arith.truncf %29 : vector<128x128xf32> to vector<128x128xbf16>
      %31 = arith.index_cast %3 : i32 to index
      %c0_16 = arith.constant 0 : index
      %32 = vector.load %arg14[%31, %c0_16] : memref<384x128xbf16, #tpu.memory_space<vmem>>, vector<128x128xbf16>
      tpu.vector_store %arg14[%31, %c0_16], %30 {strides = array<i32>} : memref<384x128xbf16, #tpu.memory_space<vmem>>, vector<128x128xbf16>,
    } else {
    }
    %c0_i32_2 = arith.constant 0 : i32
    %7 = arith.cmpi eq, %arg1, %c0_i32_2 : i32
    %8 = arith.extui %7 : i1 to i32
    %c0_i32_3 = arith.constant 0 : i32
    %9 = arith.cmpi ne, %8, %c0_i32_3 : i32
    scf.if %9 {
      %cst_11 = arith.constant 0.000000e+00 : f32
      %22 = vector.broadcast %cst_11 : f32 to vector<128x128xf32>
      %c0_12 = arith.constant 0 : index
      %c0_13 = arith.constant 0 : index
      %23 = vector.load %arg15[%c0_12, %c0_13] : memref<128x128xf32, #tpu.memory_space<vmem>>, vector<128x128xf32>
      tpu.vector_store %arg15[%c0_12, %c0_13], %22 {strides = array<i32>} : memref<128x128xf32, #tpu.memory_space<vmem>>, vector<128x128xf32>,
    } else {
    }
    %c0 = arith.constant 0 : index
    %c0_4 = arith.constant 0 : index
    %10 = vector.load %arg2[%c0, %c0_4] : memref<128x128xi8, #tpu.memory_space<vmem>>, vector<128x128xi8>
    %11 = arith.sitofp %10 : vector<128x128xi8> to vector<128x128xf32>
    %12 = arith.truncf %11 : vector<128x128xf32> to vector<128x128xbf16>
    %c0_5 = arith.constant 0 : index
    %c0_6 = arith.constant 0 : index
    %13 = vector.load %arg15[%c0_5, %c0_6] : memref<128x128xf32, #tpu.memory_space<vmem>>, vector<128x128xf32>
    %14 = arith.index_cast %3 : i32 to index
    %c0_7 = arith.constant 0 : index
    %15 = vector.load %arg14[%14, %c0_7] : memref<384x128xbf16, #tpu.memory_space<vmem>>, vector<128x128xbf16>
    %cst = arith.constant dense<0.000000e+00> : vector<128x128xf32>
    %16 = tpu.matmul %12, %15, %cst {dimension_numbers = #tpu.dot_dimension_numbers<[1], [0], [0], [1], [0, 0, 1, 1], [], []>} : vector<128x128xbf16>, vector<128x128xbf16>, vector<128x128xf32> -> vector<128x128xf32>
    %17 = arith.addf %13, %16 : vector<128x128xf32>
    %c0_8 = arith.constant 0 : index
    %c0_9 = arith.constant 0 : index
    %18 = vector.load %arg15[%c0_8, %c0_9] : memref<128x128xf32, #tpu.memory_space<vmem>>, vector<128x128xf32>
    tpu.vector_store %arg15[%c0_8, %c0_9], %17 {strides = array<i32>} : memref<128x128xf32, #tpu.memory_space<vmem>>, vector<128x128xf32>,
    %c2_i32 = arith.constant 2 : i32
    %19 = arith.cmpi eq, %arg1, %c2_i32 : i32
    %20 = arith.extui %19 : i1 to i32
    %c0_i32_10 = arith.constant 0 : i32
    %21 = arith.cmpi ne, %20, %c0_i32_10 : i32
    scf.if %21 {
      %c0_11 = arith.constant 0 : index
      %c0_12 = arith.constant 0 : index
      %22 = vector.load %arg15[%c0_11, %c0_12] : memref<128x128xf32, #tpu.memory_space<vmem>>, vector<128x128xf32>
      %23 = arith.index_cast %1 : i32 to index
      %c0_13 = arith.constant 0 : index
      %24 = vector.load %arg7[%23, %c0_13] : memref<256x1xf32, #tpu.memory_space<vmem>>, vector<128x1xf32>
      %25 = vector.broadcast %24 : vector<128x1xf32> to vector<128x128xf32>
      %26 = arith.mulf %22, %25 : vector<128x128xf32>
      %c0_14 = arith.constant 0 : index
      %c0_15 = arith.constant 0 : index
      %27 = vector.load %arg6[%c0_14, %c0_15] : memref<1x128xf32, #tpu.memory_space<vmem>>, vector<1x128xf32>
      %28 = vector.broadcast %27 : vector<1x128xf32> to vector<128x128xf32>
      %29 = arith.addf %26, %28 : vector<128x128xf32>
      %cst_16 = arith.constant 0.000000e+00 : f32
      %30 = vector.broadcast %cst_16 : f32 to vector<128x128xf32>
      %31 = arith.maximumf %29, %30 : vector<128x128xf32>
      %32 = arith.truncf %31 : vector<128x128xf32> to vector<128x128xbf16>
      %c0_17 = arith.constant 0 : index
      %c0_18 = arith.constant 0 : index
      %33 = vector.load %arg10[%c0_17, %c0_18] : memref<128x128xbf16, #tpu.memory_space<vmem>>, vector<128x128xbf16>
      %cst_19 = arith.constant dense<0.000000e+00> : vector<128x128xf32>
      %34 = tpu.matmul %32, %33, %cst_19 {dimension_numbers = #tpu.dot_dimension_numbers<[1], [0], [0], [1], [0, 0, 1, 1], [], []>} : vector<128x128xbf16>, vector<128x128xbf16>, vector<128x128xf32> -> vector<128x128xf32>
      %35 = arith.index_cast %1 : i32 to index
      %c0_20 = arith.constant 0 : index
      %36 = vector.load %arg9[%35, %c0_20] : memref<256x1xf32, #tpu.memory_space<vmem>>, vector<128x1xf32>
      %37 = vector.broadcast %36 : vector<128x1xf32> to vector<128x128xf32>
      %38 = arith.mulf %34, %37 : vector<128x128xf32>
      %39 = arith.truncf %38 : vector<128x128xf32> to vector<128x128xbf16>
      %c0_21 = arith.constant 0 : index
      %c0_22 = arith.constant 0 : index
      %40 = vector.load %arg8[%c0_21, %c0_22] : memref<96x128xi8, #tpu.memory_space<vmem>>, vector<96x128xi8>
      %41 = arith.sitofp %40 : vector<96x128xi8> to vector<96x128xf32>
      %42 = arith.truncf %41 : vector<96x128xf32> to vector<96x128xbf16>
      %cst_23 = arith.constant dense<0.000000e+00> : vector<96x128xf32>
      %43 = tpu.matmul %42, %39, %cst_23 {dimension_numbers = #tpu.dot_dimension_numbers<[1], [0], [0], [1], [0, 0, 1, 1], [], []>} : vector<96x128xbf16>, vector<128x128xbf16>, vector<96x128xf32> -> vector<96x128xf32>
      %c0_i32_24 = arith.constant 0 : i32
      %44 = arith.cmpi eq, %arg0, %c0_i32_24 : i32
      %45 = arith.extui %44 : i1 to i32
      %c0_i32_25 = arith.constant 0 : i32
      %46 = arith.cmpi ne, %45, %c0_i32_25 : i32
      scf.if %46 {
        %cst_31 = arith.constant 0.000000e+00 : f32
        %53 = vector.broadcast %cst_31 : f32 to vector<96x128xf32>
        %c0_32 = arith.constant 0 : index
        %c0_33 = arith.constant 0 : index
        %54 = vector.load %arg16[%c0_32, %c0_33] : memref<96x128xf32, #tpu.memory_space<vmem>>, vector<96x128xf32>
        tpu.vector_store %arg16[%c0_32, %c0_33], %53 {strides = array<i32>} : memref<96x128xf32, #tpu.memory_space<vmem>>, vector<96x128xf32>,
      } else {
      }
      %c0_26 = arith.constant 0 : index
      %c0_27 = arith.constant 0 : index
      %47 = vector.load %arg16[%c0_26, %c0_27] : memref<96x128xf32, #tpu.memory_space<vmem>>, vector<96x128xf32>
      %48 = arith.addf %47, %43 : vector<96x128xf32>
      %c0_28 = arith.constant 0 : index
      %c0_29 = arith.constant 0 : index
      %49 = vector.load %arg16[%c0_28, %c0_29] : memref<96x128xf32, #tpu.memory_space<vmem>>, vector<96x128xf32>
      tpu.vector_store %arg16[%c0_28, %c0_29], %48 {strides = array<i32>} : memref<96x128xf32, #tpu.memory_space<vmem>>, vector<96x128xf32>,
      %c1_i32 = arith.constant 1 : i32
      %50 = arith.cmpi eq, %arg0, %c1_i32 : i32
      %51 = arith.extui %50 : i1 to i32
      %c0_i32_30 = arith.constant 0 : i32
      %52 = arith.cmpi ne, %51, %c0_i32_30 : i32
      scf.if %52 {
        %c0_31 = arith.constant 0 : index
        %c0_32 = arith.constant 0 : index
        %53 = vector.load %arg16[%c0_31, %c0_32] : memref<96x128xf32, #tpu.memory_space<vmem>>, vector<96x128xf32>
        %c0_33 = arith.constant 0 : index
        %c0_34 = arith.constant 0 : index
        %54 = vector.load %arg12[%c0_33, %c0_34] : memref<96x1xf32, #tpu.memory_space<vmem>>, vector<96x1xf32>
        %55 = vector.broadcast %54 : vector<96x1xf32> to vector<96x128xf32>
        %56 = arith.mulf %53, %55 : vector<96x128xf32>
        %c0_35 = arith.constant 0 : index
        %c0_36 = arith.constant 0 : index
        %57 = vector.load %arg11[%c0_35, %c0_36] : memref<1x128xf32, #tpu.memory_space<vmem>>, vector<1x128xf32>
        %58 = vector.broadcast %57 : vector<1x128xf32> to vector<96x128xf32>
        %59 = arith.addf %56, %58 : vector<96x128xf32>
        %60 = arith.truncf %59 : vector<96x128xf32> to vector<96x128xbf16>
        %c0_37 = arith.constant 0 : index
        %c0_38 = arith.constant 0 : index
        %61 = vector.load %arg13[%c0_37, %c0_38] : memref<96x128xbf16, #tpu.memory_space<vmem>>, vector<96x128xbf16>
        tpu.vector_store %arg13[%c0_37, %c0_38], %60 {strides = array<i32>} : memref<96x128xbf16, #tpu.memory_space<vmem>>, vector<96x128xbf16>,
      } else {
      }
    } else {
    }
    return
  }
  func.func @transform_0(%arg0: i32, %arg1: i32) -> (i32, i32) {
    %c0_i32 = arith.constant 0 : i32
    return %arg0, %arg1 : i32, i32
  }
  func.func @transform_1(%arg0: i32, %arg1: i32) -> (i32, i32) {
    %c0_i32 = arith.constant 0 : i32
    %c0_i32_0 = arith.constant 0 : i32
    %c0_i32_1 = arith.constant 0 : i32
    return %c0_i32, %c0_i32_0 : i32, i32
  }
  func.func @transform_2(%arg0: i32, %arg1: i32) -> (i32, i32) {
    %c0_i32 = arith.constant 0 : i32
    %c0_i32_0 = arith.constant 0 : i32
    %c0_i32_1 = arith.constant 0 : i32
    return %c0_i32, %c0_i32_0 : i32, i32
  }
  func.func @transform_3(%arg0: i32, %arg1: i32) -> (i32, i32) {
    %c0_i32 = arith.constant 0 : i32
    %c0_i32_0 = arith.constant 0 : i32
    %c0_i32_1 = arith.constant 0 : i32
    return %c0_i32, %c0_i32_0 : i32, i32
  }
  func.func @transform_4(%arg0: i32, %arg1: i32) -> (i32, i32) {
    %c0_i32 = arith.constant 0 : i32
    %c0_i32_0 = arith.constant 0 : i32
    %c0_i32_1 = arith.constant 0 : i32
    return %c0_i32, %c0_i32_0 : i32, i32
  }
  func.func @transform_5(%arg0: i32, %arg1: i32) -> (i32, i32) {
    %c0_i32 = arith.constant 0 : i32
    %c0_i32_0 = arith.constant 0 : i32
    %c0_i32_1 = arith.constant 0 : i32
    return %c0_i32, %c0_i32_0 : i32, i32
  }
  func.func @transform_6(%arg0: i32, %arg1: i32) -> (i32, i32) {
    %c0_i32 = arith.constant 0 : i32
    %c0_i32_0 = arith.constant 0 : i32
    return %c0_i32, %arg0 : i32, i32
  }
  func.func @transform_7(%arg0: i32, %arg1: i32) -> (i32, i32) {
    %c0_i32 = arith.constant 0 : i32
    %c0_i32_0 = arith.constant 0 : i32
    %c0_i32_1 = arith.constant 0 : i32
    return %c0_i32, %c0_i32_0 : i32, i32
  }
  func.func @transform_8(%arg0: i32, %arg1: i32) -> (i32, i32) {
    %c0_i32 = arith.constant 0 : i32
    %c0_i32_0 = arith.constant 0 : i32
    %c0_i32_1 = arith.constant 0 : i32
    return %c0_i32, %c0_i32_0 : i32, i32
  }
  func.func @transform_9(%arg0: i32, %arg1: i32) -> (i32, i32) {
    %c0_i32 = arith.constant 0 : i32
    %c0_i32_0 = arith.constant 0 : i32
    %c0_i32_1 = arith.constant 0 : i32
    return %c0_i32, %c0_i32_0 : i32, i32
  }
  func.func @transform_10(%arg0: i32, %arg1: i32) -> (i32, i32) {
    %c0_i32 = arith.constant 0 : i32
    %c0_i32_0 = arith.constant 0 : i32
    %c0_i32_1 = arith.constant 0 : i32
    return %c0_i32, %c0_i32_0 : i32, i32
  }
  func.func @transform_11(%arg0: i32, %arg1: i32) -> (i32, i32) {
    %c0_i32 = arith.constant 0 : i32
    %c0_i32_0 = arith.constant 0 : i32
    %c0_i32_1 = arith.constant 0 : i32
    return %c0_i32, %c0_i32_0 : i32, i32
  }
}

</mosaic_0001>

<llo_original>
// kernel: gcn_forward.1
$region0: #{gcn_forward.1}
  #allocation0 [shape = 'u32[]', space=smem, size = 0x4, offset = 0x4, fixed_abs, tag = 'smem constant byte address 0x4 - core index']
  #allocation1 [shape = 'u32[144,128]{1,0:T(1,128)}', space=vmem, size = 0x12000, scoped, tag = 'internal scratch']
  #allocation2 [shape = 'bf16[384,128]{1,0:T(8,128)(2,1)}', space=vmem, size = 0x18000, scoped, tag = 'scratch operand']
  #allocation3 [shape = 'f32[128,128]{1,0:T(8,128)}', space=vmem, size = 0x10000, scoped, tag = 'scratch operand']
  #allocation4 [shape = 'f32[96,128]{1,0:T(8,128)}', space=vmem, size = 0xc000, scoped, tag = 'scratch operand']
  %s0 = inlined_call_operand.vmem [shape: s8[256,384], index: 0, kind: input, shape index: {}]
  %s1 = inlined_call_operand.vmem [shape: bf16[384,128], index: 1, kind: input, shape index: {}]
  %s2 = inlined_call_operand.vmem [shape: f32[384,1], index: 2, kind: input, shape index: {}]
  %s3 = inlined_call_operand.vmem [shape: bf16[128,128], index: 3, kind: input, shape index: {}]
  %s4 = inlined_call_operand.vmem [shape: f32[1,128], index: 4, kind: input, shape index: {}]
  %s5 = inlined_call_operand.vmem [shape: f32[256,1], index: 5, kind: input, shape index: {}]
  %s6 = inlined_call_operand.vmem [shape: s8[96,256], index: 6, kind: input, shape index: {}]
  %s7 = inlined_call_operand.vmem [shape: f32[256,1], index: 7, kind: input, shape index: {}]
  %s8 = inlined_call_operand.vmem [shape: bf16[128,128], index: 8, kind: input, shape index: {}]
  %s9 = inlined_call_operand.vmem [shape: f32[1,128], index: 9, kind: input, shape index: {}]
  %s10 = inlined_call_operand.vmem [shape: f32[96,1], index: 10, kind: input, shape index: {}]
  %s11 = inlined_call_operand.vmem [shape: bf16[96,128], index: 11, kind: output, shape index: {}]
  %s12 = sld [smem:[#allocation0]]
  $region173: #{gcn_forward.1} parent=0
    _
  %s14 = ssub.s32 1, %s12
  %s15 = scalar_select 0, %s14, %s12
  $region1: #{gcn_forward.1} parent=0
    #allocation5 [shape = 'u8[32768]{0}', space=vmem, size = 0x8000, scoped, tag = 'input window, operand 0']
    #allocation6 [shape = 'u8[24576]{0}', space=vmem, size = 0x6000, scoped, tag = 'input window, operand 6']
    loop: start=0, step=1, limit=8
    $region2: #{gcn_forward.1} parent=1 // loop_pre_header
      _
    $region3: #{gcn_forward.1} parent=1 // loop_header
      %s17 = sphi 0, %s21
      %p18 = scmp.ge.s32.totalorder %s17, 8
      %s24 = sphi 0, %s36
      %s25 = sphi 0, %s32
      %s26 = sphi 0, %s24
      %s27 = sphi 0, %s25
      %s28 = sphi 0, %s26
      %s29 = sphi 0, %s27
      %s41 = sphi 0, %s43
      %s44 = sphi 0, %s41
      %s45 = sphi 0, %s44
      %s61 = sphi 0, %s45
      %s65 = sphi 0, %s65
      %s67 = sphi 0, %s65
      %s68 = sphi 0, %s67
      %s82 = sphi 0, %s68
      %s86 = sphi 0, %s86
      %s88 = sphi 0, %s86
      %s89 = sphi 0, %s88
      %s103 = sphi 0, %s89
      %s107 = sphi 0, %s107
      %s109 = sphi 0, %s107
      %s110 = sphi 0, %s109
      %s124 = sphi 0, %s110
      %s128 = sphi 0, %s128
      %s130 = sphi 0, %s128
      %s131 = sphi 0, %s130
      %s145 = sphi 0, %s131
      %s149 = sphi 0, %s149
      %s151 = sphi 0, %s149
      %s152 = sphi 0, %s151
      %s166 = sphi 0, %s152
      %s172 = sphi 0, %s174
      %s175 = sphi 0, %s172
      %s176 = sphi 0, %s175
      %s192 = sphi 0, %s176
      %s196 = sphi 0, %s196
      %s198 = sphi 0, %s196
      %s199 = sphi 0, %s198
      %s213 = sphi 0, %s199
      %s217 = sphi 0, %s217
      %s219 = sphi 0, %s217
      %s220 = sphi 0, %s219
      %s234 = sphi 0, %s220
      %s238 = sphi 0, %s238
      %s240 = sphi 0, %s238
      %s241 = sphi 0, %s240
      %s255 = sphi 0, %s241
      %s259 = sphi 0, %s259
      %s261 = sphi 0, %s259
      %s262 = sphi 0, %s261
      %s276 = sphi 0, %s262
      %s280 = sphi 0, %s280
      %s282 = sphi 0, %s280
      %s283 = sphi 0, %s282
      %s297 = sphi 0, %s283
    $region4: #{gcn_forward.1} parent=1 // loop_header_branch
      %20 = sbr.rel (%p18) target = $region8
    $region5: #{gcn_forward.1} parent=1 // loop_body
      %s22 = ssub.s32 %s17, 1
      %s23 = ssub.s32 %s17, 2
      %s30 = sadd.s32 1, %s25
      %p31 = scmp.ge.s32.totalorder %s30, 3
      %s32 = scalar_select %p31, 0, %s30
      %s33 = sadd.s32 1, %s24
      %s34 = scalar_select %p31, %s33, %s24
      %p35 = scmp.ge.s32.totalorder %s34, 2
      %s36 = scalar_select %p35, 0, %s34
      %s37 = ssub.s32 %s24, %s36
      %s38 = ssub.s32 %s25, %s32
      %s39 = sor.u32 %s37, %s38
      %p40 = scmp.eq.s32.totalorder %s39, 0
      %s42 = sadd.s32 %s41, 1
      %s43 = scalar_select %p40, %s41, %s42
      %p46 = pneg %p40
      %p47 = scmp.eq.s32.totalorder %s17, 5
      %p48 = por %p46, %p47
      %p49 = scmp.ne.s32.totalorder %s41, %s44
      %p50 = scmp.eq.s32.totalorder %s17, 0
      %p51 = por %p49, %p50
      %p52 = scmp.ne.s32.totalorder %s41, %s44
      %p53 = scmp.eq.s32.totalorder %s22, 5
      %p54 = por %p52, %p53
      %p55 = scmp.ne.s32.totalorder %s44, %s45
      %p56 = scmp.eq.s32.totalorder %s22, 0
      %p57 = por %p55, %p56
      %p58 = scmp.ne.s32.totalorder %s44, %s45
      %p59 = scmp.eq.s32.totalorder %s23, 5
      %p60 = por %p58, %p59
      %p62 = scmp.ne.s32.totalorder %s45, %s61
      %p63 = scmp.eq.s32.totalorder %s23, 0
      %p64 = por %p62, %p63
      %s66 = sadd.s32 %s65, 1
      %p69 = scmp.eq.s32.totalorder %s17, 5
      %p70 = scmp.ne.s32.totalorder %s65, %s67
      %p71 = scmp.eq.s32.totalorder %s17, 0
      %p72 = por %p70, %p71
      %p73 = scmp.ne.s32.totalorder %s65, %s67
      %p74 = scmp.eq.s32.totalorder %s22, 5
      %p75 = por %p73, %p74
      %p76 = scmp.ne.s32.totalorder %s67, %s68
      %p77 = scmp.eq.s32.totalorder %s22, 0
      %p78 = por %p76, %p77
      %p79 = scmp.ne.s32.totalorder %s67, %s68
      %p80 = scmp.eq.s32.totalorder %s23, 5
      %p81 = por %p79, %p80
      %p83 = scmp.ne.s32.totalorder %s68, %s82
      %p84 = scmp.eq.s32.totalorder %s23, 0
      %p85 = por %p83, %p84
      %s87 = sadd.s32 %s86, 1
      %p90 = scmp.eq.s32.totalorder %s17, 5
      %p91 = scmp.ne.s32.totalorder %s86, %s88
      %p92 = scmp.eq.s32.totalorder %s17, 0
      %p93 = por %p91, %p92
      %p94 = scmp.ne.s32.totalorder %s86, %s88
      %p95 = scmp.eq.s32.totalorder %s22, 5
      %p96 = por %p94, %p95
      %p97 = scmp.ne.s32.totalorder %s88, %s89
      %p98 = scmp.eq.s32.totalorder %s22, 0
      %p99 = por %p97, %p98
      %p100 = scmp.ne.s32.totalorder %s88, %s89
      %p101 = scmp.eq.s32.totalorder %s23, 5
      %p102 = por %p100, %p101
      %p104 = scmp.ne.s32.totalorder %s89, %s103
      %p105 = scmp.eq.s32.totalorder %s23, 0
      %p106 = por %p104, %p105
      %s108 = sadd.s32 %s107, 1
      %p111 = scmp.eq.s32.totalorder %s17, 5
      %p112 = scmp.ne.s32.totalorder %s107, %s109
      %p113 = scmp.eq.s32.totalorder %s17, 0
      %p114 = por %p112, %p113
      %p115 = scmp.ne.s32.totalorder %s107, %s109
      %p116 = scmp.eq.s32.totalorder %s22, 5
      %p117 = por %p115, %p116
      %p118 = scmp.ne.s32.totalorder %s109, %s110
      %p119 = scmp.eq.s32.totalorder %s22, 0
      %p120 = por %p118, %p119
      %p121 = scmp.ne.s32.totalorder %s109, %s110
      %p122 = scmp.eq.s32.totalorder %s23, 5
      %p123 = por %p121, %p122
      %p125 = scmp.ne.s32.totalorder %s110, %s124
      %p126 = scmp.eq.s32.totalorder %s23, 0
      %p127 = por %p125, %p126
      %s129 = sadd.s32 %s128, 1
      %p132 = scmp.eq.s32.totalorder %s17, 5
      %p133 = scmp.ne.s32.totalorder %s128, %s130
      %p134 = scmp.eq.s32.totalorder %s17, 0
      %p135 = por %p133, %p134
      %p136 = scmp.ne.s32.totalorder %s128, %s130
      %p137 = scmp.eq.s32.totalorder %s22, 5
      %p138 = por %p136, %p137
      %p139 = scmp.ne.s32.totalorder %s130, %s131
      %p140 = scmp.eq.s32.totalorder %s22, 0
      %p141 = por %p139, %p140
      %p142 = scmp.ne.s32.totalorder %s130, %s131
      %p143 = scmp.eq.s32.totalorder %s23, 5
      %p144 = por %p142, %p143
      %p146 = scmp.ne.s32.totalorder %s131, %s145
      %p147 = scmp.eq.s32.totalorder %s23, 0
      %p148 = por %p146, %p147
      %s150 = sadd.s32 %s149, 1
      %p153 = scmp.eq.s32.totalorder %s17, 5
      %p154 = scmp.ne.s32.totalorder %s149, %s151
      %p155 = scmp.eq.s32.totalorder %s17, 0
      %p156 = por %p154, %p155
      %p157 = scmp.ne.s32.totalorder %s149, %s151
      %p158 = scmp.eq.s32.totalorder %s22, 5
      %p159 = por %p157, %p158
      %p160 = scmp.ne.s32.totalorder %s151, %s152
      %p161 = scmp.eq.s32.totalorder %s22, 0
      %p162 = por %p160, %p161
      %p163 = scmp.ne.s32.totalorder %s151, %s152
      %p164 = scmp.eq.s32.totalorder %s23, 5
      %p165 = por %p163, %p164
      %p167 = scmp.ne.s32.totalorder %s152, %s166
      %p168 = scmp.eq.s32.totalorder %s23, 0
      %p169 = por %p167, %p168
      %s170 = ssub.s32 %s24, %s36
      %p171 = scmp.eq.s32.totalorder %s170, 0
      %s173 = sadd.s32 %s172, 1
      %s174 = scalar_select %p171, %s172, %s173
      %p177 = pneg %p171
      %p178 = scmp.eq.s32.totalorder %s17, 5
      %p179 = por %p177, %p178
      %p180 = scmp.ne.s32.totalorder %s172, %s175
      %p181 = scmp.eq.s32.totalorder %s17, 0
      %p182 = por %p180, %p181
      %p183 = scmp.ne.s32.totalorder %s172, %s175
      %p184 = scmp.eq.s32.totalorder %s22, 5
      %p185 = por %p183, %p184
      %p186 = scmp.ne.s32.totalorder %s175, %s176
      %p187 = scmp.eq.s32.totalorder %s22, 0
      %p188 = por %p186, %p187
      %p189 = scmp.ne.s32.totalorder %s175, %s176
      %p190 = scmp.eq.s32.totalorder %s23, 5
      %p191 = por %p189, %p190
      %p193 = scmp.ne.s32.totalorder %s176, %s192
      %p194 = scmp.eq.s32.totalorder %s23, 0
      %p195 = por %p193, %p194
      %s197 = sadd.s32 %s196, 1
      %p200 = scmp.eq.s32.totalorder %s17, 5
      %p201 = scmp.ne.s32.totalorder %s196, %s198
      %p202 = scmp.eq.s32.totalorder %s17, 0
      %p203 = por %p201, %p202
      %p204 = scmp.ne.s32.totalorder %s196, %s198
      %p205 = scmp.eq.s32.totalorder %s22, 5
      %p206 = por %p204, %p205
      %p207 = scmp.ne.s32.totalorder %s198, %s199
      %p208 = scmp.eq.s32.totalorder %s22, 0
      %p209 = por %p207, %p208
      %p210 = scmp.ne.s32.totalorder %s198, %s199
      %p211 = scmp.eq.s32.totalorder %s23, 5
      %p212 = por %p210, %p211
      %p214 = scmp.ne.s32.totalorder %s199, %s213
      %p215 = scmp.eq.s32.totalorder %s23, 0
      %p216 = por %p214, %p215
      %s218 = sadd.s32 %s217, 1
      %p221 = scmp.eq.s32.totalorder %s17, 5
      %p222 = scmp.ne.s32.totalorder %s217, %s219
      %p223 = scmp.eq.s32.totalorder %s17, 0
      %p224 = por %p222, %p223
      %p225 = scmp.ne.s32.totalorder %s217, %s219
      %p226 = scmp.eq.s32.totalorder %s22, 5
      %p227 = por %p225, %p226
      %p228 = scmp.ne.s32.totalorder %s219, %s220
      %p229 = scmp.eq.s32.totalorder %s22, 0
      %p230 = por %p228, %p229
      %p231 = scmp.ne.s32.totalorder %s219, %s220
      %p232 = scmp.eq.s32.totalorder %s23, 5
      %p233 = por %p231, %p232
      %p235 = scmp.ne.s32.totalorder %s220, %s234
      %p236 = scmp.eq.s32.totalorder %s23, 0
      %p237 = por %p235, %p236
      %s239 = sadd.s32 %s238, 1
      %p242 = scmp.eq.s32.totalorder %s17, 5
      %p243 = scmp.ne.s32.totalorder %s238, %s240
      %p244 = scmp.eq.s32.totalorder %s17, 0
      %p245 = por %p243, %p244
      %p246 = scmp.ne.s32.totalorder %s238, %s240
      %p247 = scmp.eq.s32.totalorder %s22, 5
      %p248 = por %p246, %p247
      %p249 = scmp.ne.s32.totalorder %s240, %s241
      %p250 = scmp.eq.s32.totalorder %s22, 0
      %p251 = por %p249, %p250
      %p252 = scmp.ne.s32.totalorder %s240, %s241
      %p253 = scmp.eq.s32.totalorder %s23, 5
      %p254 = por %p252, %p253
      %p256 = scmp.ne.s32.totalorder %s241, %s255
      %p257 = scmp.eq.s32.totalorder %s23, 0
      %p258 = por %p256, %p257
      %s260 = sadd.s32 %s259, 1
      %p263 = scmp.eq.s32.totalorder %s17, 5
      %p264 = scmp.ne.s32.totalorder %s259, %s261
      %p265 = scmp.eq.s32.totalorder %s17, 0
      %p266 = por %p264, %p265
      %p267 = scmp.ne.s32.totalorder %s259, %s261
      %p268 = scmp.eq.s32.totalorder %s22, 5
      %p269 = por %p267, %p268
      %p270 = scmp.ne.s32.totalorder %s261, %s262
      %p271 = scmp.eq.s32.totalorder %s22, 0
      %p272 = por %p270, %p271
      %p273 = scmp.ne.s32.totalorder %s261, %s262
      %p274 = scmp.eq.s32.totalorder %s23, 5
      %p275 = por %p273, %p274
      %p277 = scmp.ne.s32.totalorder %s262, %s276
      %p278 = scmp.eq.s32.totalorder %s23, 0
      %p279 = por %p277, %p278
      %s281 = sadd.s32 %s280, 1
      %p284 = scmp.eq.s32.totalorder %s17, 5
      %p285 = scmp.ne.s32.totalorder %s280, %s282
      %p286 = scmp.eq.s32.totalorder %s17, 0
      %p287 = por %p285, %p286
      %p288 = scmp.ne.s32.totalorder %s280, %s282
      %p289 = scmp.eq.s32.totalorder %s22, 5
      %p290 = por %p288, %p289
      %p291 = scmp.ne.s32.totalorder %s282, %s283
      %p292 = scmp.eq.s32.totalorder %s22, 0
      %p293 = por %p291, %p292
      %p294 = scmp.ne.s32.totalorder %s282, %s283
      %p295 = scmp.eq.s32.totalorder %s23, 5
      %p296 = por %p294, %p295
      %p298 = scmp.ne.s32.totalorder %s283, %s297
      %p299 = scmp.eq.s32.totalorder %s23, 0
      %p300 = por %p298, %p299
      %p301 = scmp.le.s32.totalorder 1, %s17
      %p302 = scmp.lt.s32.totalorder %s17, 7
      %p303 = pnand %p301, %p302
      %p304 = pneg %p303
      // Predicated region
      $region9: #{gcn_forward.1} parent=5 // pred_check
        _
      $region10: #{gcn_forward.1} parent=5 // pred_check_branch
        %306 = sbr.rel (%p303) target = $region12
      $region11: #{gcn_forward.1} parent=5 // pred_region
        %s307 = ssub.s32 %s17, 1
        // Predicated region
        $region13: #{gcn_forward.1} parent=11 // pred_check
          %p308 = pneg %p78
        $region14: #{gcn_forward.1} parent=11 // pred_check_branch
          %310 = sbr.rel (%p308) target = $region16
        $region15: #{gcn_forward.1} parent=11 // pred_region
          _
        $region16: #{gcn_forward.1} parent=11 // pred_fallthru
          _
        // Predicated region
        $region17: #{gcn_forward.1} parent=11 // pred_check
          %p311 = pneg %p99
        $region18: #{gcn_forward.1} parent=11 // pred_check_branch
          %313 = sbr.rel (%p311) target = $region20
        $region19: #{gcn_forward.1} parent=11 // pred_region
          _
        $region20: #{gcn_forward.1} parent=11 // pred_fallthru
          _
        // Predicated region
        $region21: #{gcn_forward.1} parent=11 // pred_check
          %p314 = pneg %p120
        $region22: #{gcn_forward.1} parent=11 // pred_check_branch
          %316 = sbr.rel (%p314) target = $region24
        $region23: #{gcn_forward.1} parent=11 // pred_region
          _
        $region24: #{gcn_forward.1} parent=11 // pred_fallthru
          _
        // Predicated region
        $region25: #{gcn_forward.1} parent=11 // pred_check
          %p317 = pneg %p141
        $region26: #{gcn_forward.1} parent=11 // pred_check_branch
          %319 = sbr.rel (%p317) target = $region28
        $region27: #{gcn_forward.1} parent=11 // pred_region
          _
        $region28: #{gcn_forward.1} parent=11 // pred_fallthru
          _
        // Predicated region
        $region29: #{gcn_forward.1} parent=11 // pred_check
          %p320 = pneg %p162
        $region30: #{gcn_forward.1} parent=11 // pred_check_branch
          %322 = sbr.rel (%p320) target = $region32
        $region31: #{gcn_forward.1} parent=11 // pred_region
          _
        $region32: #{gcn_forward.1} parent=11 // pred_fallthru
          _
        // Predicated region
        $region33: #{gcn_forward.1} parent=11 // pred_check
          %p323 = pneg %p209
        $region34: #{gcn_forward.1} parent=11 // pred_check_branch
          %325 = sbr.rel (%p323) target = $region36
        $region35: #{gcn_forward.1} parent=11 // pred_region
          _
        $region36: #{gcn_forward.1} parent=11 // pred_fallthru
          _
        // Predicated region
        $region37: #{gcn_forward.1} parent=11 // pred_check
          %p326 = pneg %p230
        $region38: #{gcn_forward.1} parent=11 // pred_check_branch
          %328 = sbr.rel (%p326) target = $region40
        $region39: #{gcn_forward.1} parent=11 // pred_region
          _
        $region40: #{gcn_forward.1} parent=11 // pred_fallthru
          _
        // Predicated region
        $region41: #{gcn_forward.1} parent=11 // pred_check
          %p329 = pneg %p251
        $region42: #{gcn_forward.1} parent=11 // pred_check_branch
          %331 = sbr.rel (%p329) target = $region44
        $region43: #{gcn_forward.1} parent=11 // pred_region
          _
        $region44: #{gcn_forward.1} parent=11 // pred_fallthru
          _
        // Predicated region
        $region45: #{gcn_forward.1} parent=11 // pred_check
          %p332 = pneg %p272
        $region46: #{gcn_forward.1} parent=11 // pred_check_branch
          %334 = sbr.rel (%p332) target = $region48
        $region47: #{gcn_forward.1} parent=11 // pred_region
          _
        $region48: #{gcn_forward.1} parent=11 // pred_fallthru
          _
      $region12: #{gcn_forward.1} parent=5 // pred_fallthru
        _
      %p335 = scmp.lt.s32.totalorder %s17, 6
      // Predicated region
      $region49: #{gcn_forward.1} parent=5 // pred_check
        %p336 = pneg %p335
      $region50: #{gcn_forward.1} parent=5 // pred_check_branch
        %338 = sbr.rel (%p336) target = $region52
      $region51: #{gcn_forward.1} parent=5 // pred_region
        // Predicated region
        $region53: #{gcn_forward.1} parent=51 // pred_check
          %p339 = pneg %p51
        $region54: #{gcn_forward.1} parent=51 // pred_check_branch
          %341 = sbr.rel (%p339) target = $region56
        $region55: #{gcn_forward.1} parent=51 // pred_region
          %s342 = sand.u32 %s41, 1
          %s343 = sand.u32 %s41, 1
          %s344 = smul.addr %s343, 32
          %s345 = scalar_lea.vmem [#allocation5], %s344
          %s346 = smul.u32 4, %s24
          %s347 = smul.addr %s346, 3
          %s348 = sadd.s32 %s25, %s347
          %s349 = smul.addr %s348, 8
          %s350 = scalar_lea.vmem %s0, %s349
          // Predicated region
          $region57: #{gcn_forward.1} parent=55 // pred_check
            _
          $region58: #{gcn_forward.1} parent=55 // pred_check_branch
            %352 = sbr.rel (0) target = $region60
          $region59: #{gcn_forward.1} parent=55 // pred_region
            // Predicated region
            $region61: #{gcn_forward.1} parent=59 // pred_check
              _
            $region62: #{gcn_forward.1} parent=59 // pred_check_branch
              %354 = sbr.rel (0) target = $region64
            $region63: #{gcn_forward.1} parent=59 // pred_region
              // Predicated region
              $region76: #{gcn_forward.1} parent=63 // pred_check
                _
              $region77: #{gcn_forward.1} parent=63 // pred_check_branch
                %376 = sbr.rel (0) target = $region79
              $region78: #{gcn_forward.1} parent=63 // pred_region
                loop: start=0, step=1, limit=1
                $region80: #{gcn_forward.1} parent=78 // loop_pre_header
                  _
                $region81: #{gcn_forward.1} parent=78 // loop_header
                  %s378 = sphi 0, %s382
                  %p379 = scmp.ge.s32.totalorder %s378, 1
                  %s383 = sphi %s350, %s350
                  %s384 = sphi %s345, %s345
                $region82: #{gcn_forward.1} parent=78 // loop_header_branch
                  %381 = sbr.rel (%p379) target = $region86
                $region83: #{gcn_forward.1} parent=78 // loop_body
                  %v385 = vld [vmem:[%s383] sm:$0xff]
                  %386 = vst [vmem:[%s384] sm:$0xff] %v385
                  %v387 = vld [vmem:[%s383 + $0x18] sm:$0xff]
                  %388 = vst [vmem:[%s384 + $0x8] sm:$0xff] %v387
                  %v389 = vld [vmem:[%s383 + $0x30] sm:$0xff]
                  %390 = vst [vmem:[%s384 + $0x10] sm:$0xff] %v389
                  %v391 = vld [vmem:[%s383 + $0x48] sm:$0xff]
                  %392 = vst [vmem:[%s384 + $0x18] sm:$0xff] %v391
                $region84: #{gcn_forward.1} parent=78 // loop_footer
                  %s382 = sadd.s32 1, %s378
                $region85: #{gcn_forward.1} parent=78 // loop_footer_branch
                  %377 = sbr.rel target = $region81
                $region86: #{gcn_forward.1} parent=78 // loop_exit
                  _
              $region79: #{gcn_forward.1} parent=63 // pred_fallthru
                _
              // Predicated region
              $region87: #{gcn_forward.1} parent=63 // pred_check
                _
              $region88: #{gcn_forward.1} parent=63 // pred_check_branch
                %394 = sbr.rel target = $region90
              $region89: #{gcn_forward.1} parent=63 // pred_region
                _
              $region90: #{gcn_forward.1} parent=63 // pred_fallthru
                _
            $region64: #{gcn_forward.1} parent=59 // pred_fallthru
              _
            // Predicated region
            $region65: #{gcn_forward.1} parent=59 // pred_check
              _
            $region66: #{gcn_forward.1} parent=59 // pred_check_branch
              %356 = sbr.rel target = $region68
            $region67: #{gcn_forward.1} parent=59 // pred_region
              %s358 = ssub.s32 256, 1
              loop: start=0, step=1, limit=1
              $region69: #{gcn_forward.1} parent=67 // loop_pre_header
                _
              $region70: #{gcn_forward.1} parent=67 // loop_header
                %s360 = sphi 0, %s364
                %p361 = scmp.ge.s32.totalorder %s360, 1
                %s365 = sphi %s350, %s350
                %s366 = sphi %s345, %s345
              $region71: #{gcn_forward.1} parent=67 // loop_header_branch
                %363 = sbr.rel (%p361) target = $region75
              $region72: #{gcn_forward.1} parent=67 // loop_body
                %v367 = vld [vmem:[%s365] sm:%s358]
                %368 = vst [vmem:[%s366] sm:%s358] %v367
                %v369 = vld [vmem:[%s365 + $0x18] sm:%s358]
                %370 = vst [vmem:[%s366 + $0x8] sm:%s358] %v369
                %v371 = vld [vmem:[%s365 + $0x30] sm:%s358]
                %372 = vst [vmem:[%s366 + $0x10] sm:%s358] %v371
                %v373 = vld [vmem:[%s365 + $0x48] sm:%s358]
                %374 = vst [vmem:[%s366 + $0x18] sm:%s358] %v373
              $region73: #{gcn_forward.1} parent=67 // loop_footer
                %s364 = sadd.s32 1, %s360
              $region74: #{gcn_forward.1} parent=67 // loop_footer_branch
                %359 = sbr.rel target = $region70
              $region75: #{gcn_forward.1} parent=67 // loop_exit
                _
            $region68: #{gcn_forward.1} parent=59 // pred_fallthru
              _
          $region60: #{gcn_forward.1} parent=55 // pred_fallthru
            _
          %395 = vnop
        $region56: #{gcn_forward.1} parent=51 // pred_fallthru
          _
        // Predicated region
        $region91: #{gcn_forward.1} parent=51 // pred_check
          %p396 = pneg %p182
        $region92: #{gcn_forward.1} parent=51 // pred_check_branch
          %398 = sbr.rel (%p396) target = $region94
        $region93: #{gcn_forward.1} parent=51 // pred_region
          %s399 = sand.u32 %s172, 1
          %s400 = sand.u32 %s172, 1
          %s401 = smul.addr %s400, 24
          %s402 = scalar_lea.vmem [#allocation6], %s401
          %s403 = smul.addr %s24, 8
          %s404 = scalar_lea.vmem %s6, %s403
          // Predicated region
          $region95: #{gcn_forward.1} parent=93 // pred_check
            _
          $region96: #{gcn_forward.1} parent=93 // pred_check_branch
            %406 = sbr.rel (0) target = $region98
          $region97: #{gcn_forward.1} parent=93 // pred_region
            // Predicated region
            $region99: #{gcn_forward.1} parent=97 // pred_check
              _
            $region100: #{gcn_forward.1} parent=97 // pred_check_branch
              %408 = sbr.rel (0) target = $region102
            $region101: #{gcn_forward.1} parent=97 // pred_region
              // Predicated region
              $region114: #{gcn_forward.1} parent=101 // pred_check
                _
              $region115: #{gcn_forward.1} parent=101 // pred_check_branch
                %428 = sbr.rel (0) target = $region117
              $region116: #{gcn_forward.1} parent=101 // pred_region
                loop: start=0, step=1, limit=1
                $region118: #{gcn_forward.1} parent=116 // loop_pre_header
                  _
                $region119: #{gcn_forward.1} parent=116 // loop_header
                  %s430 = sphi 0, %s434
                  %p431 = scmp.ge.s32.totalorder %s430, 1
                  %s435 = sphi %s404, %s404
                  %s436 = sphi %s402, %s402
                $region120: #{gcn_forward.1} parent=116 // loop_header_branch
                  %433 = sbr.rel (%p431) target = $region124
                $region121: #{gcn_forward.1} parent=116 // loop_body
                  %v437 = vld [vmem:[%s435] sm:$0xff]
                  %438 = vst [vmem:[%s436] sm:$0xff] %v437
                  %v439 = vld [vmem:[%s435 + $0x10] sm:$0xff]
                  %440 = vst [vmem:[%s436 + $0x8] sm:$0xff] %v439
                  %v441 = vld [vmem:[%s435 + $0x20] sm:$0xff]
                  %442 = vst [vmem:[%s436 + $0x10] sm:$0xff] %v441
                $region122: #{gcn_forward.1} parent=116 // loop_footer
                  %s434 = sadd.s32 1, %s430
                $region123: #{gcn_forward.1} parent=116 // loop_footer_branch
                  %429 = sbr.rel target = $region119
                $region124: #{gcn_forward.1} parent=116 // loop_exit
                  _
              $region117: #{gcn_forward.1} parent=101 // pred_fallthru
                _
              // Predicated region
              $region125: #{gcn_forward.1} parent=101 // pred_check
                _
              $region126: #{gcn_forward.1} parent=101 // pred_check_branch
                %444 = sbr.rel target = $region128
              $region127: #{gcn_forward.1} parent=101 // pred_region
                _
              $region128: #{gcn_forward.1} parent=101 // pred_fallthru
                _
            $region102: #{gcn_forward.1} parent=97 // pred_fallthru
              _
            // Predicated region
            $region103: #{gcn_forward.1} parent=97 // pred_check
              _
            $region104: #{gcn_forward.1} parent=97 // pred_check_branch
              %410 = sbr.rel target = $region106
            $region105: #{gcn_forward.1} parent=97 // pred_region
              %s412 = ssub.s32 256, 1
              loop: start=0, step=1, limit=1
              $region107: #{gcn_forward.1} parent=105 // loop_pre_header
                _
              $region108: #{gcn_forward.1} parent=105 // loop_header
                %s414 = sphi 0, %s418
                %p415 = scmp.ge.s32.totalorder %s414, 1
                %s419 = sphi %s404, %s404
                %s420 = sphi %s402, %s402
              $region109: #{gcn_forward.1} parent=105 // loop_header_branch
                %417 = sbr.rel (%p415) target = $region113
              $region110: #{gcn_forward.1} parent=105 // loop_body
                %v421 = vld [vmem:[%s419] sm:%s412]
                %422 = vst [vmem:[%s420] sm:%s412] %v421
                %v423 = vld [vmem:[%s419 + $0x10] sm:%s412]
                %424 = vst [vmem:[%s420 + $0x8] sm:%s412] %v423
                %v425 = vld [vmem:[%s419 + $0x20] sm:%s412]
                %426 = vst [vmem:[%s420 + $0x10] sm:%s412] %v425
              $region111: #{gcn_forward.1} parent=105 // loop_footer
                %s418 = sadd.s32 1, %s414
              $region112: #{gcn_forward.1} parent=105 // loop_footer_branch
                %413 = sbr.rel target = $region108
              $region113: #{gcn_forward.1} parent=105 // loop_exit
                _
            $region106: #{gcn_forward.1} parent=97 // pred_fallthru
              _
          $region98: #{gcn_forward.1} parent=93 // pred_fallthru
            _
          %445 = vnop
        $region94: #{gcn_forward.1} parent=51 // pred_fallthru
          _
      $region52: #{gcn_forward.1} parent=5 // pred_fallthru
        _
      %p446 = scmp.le.s32.totalorder 1, %s17
      %p447 = scmp.lt.s32.totalorder %s17, 7
      %p448 = pnand %p446, %p447
      %p449 = pneg %p448
      // Predicated region
      $region129: #{gcn_forward.1} parent=5 // pred_check
        _
      $region130: #{gcn_forward.1} parent=5 // pred_check_branch
        %451 = sbr.rel (%p448) target = $region132
      $region131: #{gcn_forward.1} parent=5 // pred_region
        %s452 = ssub.s32 %s17, 1
        %s453 = sand.u32 %s44, 1
        %s454 = sand.u32 %s44, 1
        %s455 = smul.addr %s454, 32
        %s456 = scalar_lea.vmem [#allocation5], %s455
        // Predicated region
        $region133: #{gcn_forward.1} parent=131 // pred_check
          %p457 = pneg %p57
        $region134: #{gcn_forward.1} parent=131 // pred_check_branch
          %459 = sbr.rel (%p457) target = $region136
        $region135: #{gcn_forward.1} parent=131 // pred_region
          _
        $region136: #{gcn_forward.1} parent=131 // pred_fallthru
          _
        %s460 = sand.u32 %s175, 1
        %s461 = sand.u32 %s175, 1
        %s462 = smul.addr %s461, 24
        %s463 = scalar_lea.vmem [#allocation6], %s462
        // Predicated region
        $region137: #{gcn_forward.1} parent=131 // pred_check
          %p464 = pneg %p188
        $region138: #{gcn_forward.1} parent=131 // pred_check_branch
          %466 = sbr.rel (%p464) target = $region140
        $region139: #{gcn_forward.1} parent=131 // pred_region
          _
        $region140: #{gcn_forward.1} parent=131 // pred_fallthru
          _
        %s467 = sand.u32 %s44, 1
        %s468 = sand.u32 %s44, 1
        %s469 = smul.addr %s468, 32
        %s470 = scalar_lea.vmem [#allocation5], %s469
        %p471 = pneg %p57
        %p472 = pneg %p54
        %p473 = pneg %p78
        %p474 = pneg %p75
        %p475 = pneg %p99
        %p476 = pneg %p96
        %p477 = pneg %p120
        %p478 = pneg %p117
        %p479 = pneg %p141
        %p480 = pneg %p138
        %p481 = pneg %p162
        %p482 = pneg %p159
        %s483 = sand.u32 %s175, 1
        %s484 = sand.u32 %s175, 1
        %s485 = smul.addr %s484, 24
        %s486 = scalar_lea.vmem [#allocation6], %s485
        %p487 = pneg %p188
        %p488 = pneg %p185
        %p489 = pneg %p209
        %p490 = pneg %p206
        %p491 = pneg %p230
        %p492 = pneg %p227
        %p493 = pneg %p251
        %p494 = pneg %p248
        %p495 = pneg %p272
        %p496 = pneg %p269
        %p497 = pneg %p293
        %p498 = pneg %p290
        %s499 = smul.u32 4, %s26
        %s501 = smul.u32 %s26, 128
        %s502 = smul.u32 %s27, 128
        %p503 = scmp.eq.s32.totalorder %s26, 0
        // Predicated region
        $region141: #{gcn_forward.1} parent=131 // pred_check
          %p504 = pneg %p503
        $region142: #{gcn_forward.1} parent=131 // pred_check_branch
          %506 = sbr.rel (%p504) target = $region144
        $region143: #{gcn_forward.1} parent=131 // pred_region
          %s507 = sshra.s32 %s502, 3
          %s508 = sand.u32 %s502, 7
          %s509 = smul.addr %s507, 4
          %s510 = scalar_lea.vmem %s1, %s509
          %v511 = vld [vmem:[%s510] sm:$0xf]
          %v512 = vld [vmem:[%s510 + $0x4] sm:$0xf]
          %v513 = vld [vmem:[%s510 + $0x8] sm:$0xf]
          %v514 = vld [vmem:[%s510 + $0xc] sm:$0xf]
          %v515 = vld [vmem:[%s510 + $0x10] sm:$0xf]
          %v516 = vld [vmem:[%s510 + $0x14] sm:$0xf]
          %v517 = vld [vmem:[%s510 + $0x18] sm:$0xf]
          %v518 = vld [vmem:[%s510 + $0x1c] sm:$0xf]
          %v519 = vld [vmem:[%s510 + $0x20] sm:$0xf]
          %v520 = vld [vmem:[%s510 + $0x24] sm:$0xf]
          %v521 = vld [vmem:[%s510 + $0x28] sm:$0xf]
          %v522 = vld [vmem:[%s510 + $0x2c] sm:$0xf]
          %v523 = vld [vmem:[%s510 + $0x30] sm:$0xf]
          %v524 = vld [vmem:[%s510 + $0x34] sm:$0xf]
          %v525 = vld [vmem:[%s510 + $0x38] sm:$0xf]
          %v526 = vld [vmem:[%s510 + $0x3c] sm:$0xf]
          %v527 = vld [vmem:[%s3] sm:$0xf]
          %v528 = vld [vmem:[%s3 + $0x4] sm:$0xf]
          %v529 = vld [vmem:[%s3 + $0x8] sm:$0xf]
          %v530 = vld [vmem:[%s3 + $0xc] sm:$0xf]
          %v531 = vld [vmem:[%s3 + $0x10] sm:$0xf]
          %v532 = vld [vmem:[%s3 + $0x14] sm:$0xf]
          %v533 = vld [vmem:[%s3 + $0x18] sm:$0xf]
          %v534 = vld [vmem:[%s3 + $0x1c] sm:$0xf]
          %v535 = vld [vmem:[%s3 + $0x20] sm:$0xf]
          %v536 = vld [vmem:[%s3 + $0x24] sm:$0xf]
          %v537 = vld [vmem:[%s3 + $0x28] sm:$0xf]
          %v538 = vld [vmem:[%s3 + $0x2c] sm:$0xf]
          %v539 = vld [vmem:[%s3 + $0x30] sm:$0xf]
          %v540 = vld [vmem:[%s3 + $0x34] sm:$0xf]
          %v541 = vld [vmem:[%s3 + $0x38] sm:$0xf]
          %v542 = vld [vmem:[%s3 + $0x3c] sm:$0xf]
          %v559 = vunpack.c.l.b16 %v511
          %v560 = vunpack.c.l.b16 %v512
          %v561 = vunpack.c.l.b16 %v513
          %v562 = vunpack.c.l.b16 %v514
          %v563 = vunpack.c.l.b16 %v515
          %v564 = vunpack.c.l.b16 %v516
          %v565 = vunpack.c.l.b16 %v517
          %v566 = vunpack.c.l.b16 %v518
          %v567 = vunpack.c.l.b16 %v519
          %v568 = vunpack.c.l.b16 %v520
          %v569 = vunpack.c.l.b16 %v521
          %v570 = vunpack.c.l.b16 %v522
          %v571 = vunpack.c.l.b16 %v523
          %v572 = vunpack.c.l.b16 %v524
          %v573 = vunpack.c.l.b16 %v525
          %v574 = vunpack.c.l.b16 %v526
          %v575 = vpack.c.b16 %v560, %v559
          %v576 = vpack.c.b16 %v562, %v561
          %v577 = vpack.c.b16 %v564, %v563
          %v578 = vpack.c.b16 %v566, %v565
          %v579 = vpack.c.b16 %v568, %v567
          %v580 = vpack.c.b16 %v570, %v569
          %v581 = vpack.c.b16 %v572, %v571
          %v582 = vpack.c.b16 %v574, %v573
          %v607 = vunpack.c.l.b16 %v527
          %v608 = vunpack.c.l.b16 %v528
          %v609 = vunpack.c.l.b16 %v529
          %v610 = vunpack.c.l.b16 %v530
          %v611 = vunpack.c.l.b16 %v531
          %v612 = vunpack.c.l.b16 %v532
          %v613 = vunpack.c.l.b16 %v533
          %v614 = vunpack.c.l.b16 %v534
          %v615 = vunpack.c.l.b16 %v535
          %v616 = vunpack.c.l.b16 %v536
          %v617 = vunpack.c.l.b16 %v537
          %v618 = vunpack.c.l.b16 %v538
          %v619 = vunpack.c.l.b16 %v539
          %v620 = vunpack.c.l.b16 %v540
          %v621 = vunpack.c.l.b16 %v541
          %v622 = vunpack.c.l.b16 %v542
          %v623 = vpack.c.b16 %v608, %v607
          %v624 = vpack.c.b16 %v610, %v609
          %v625 = vpack.c.b16 %v612, %v611
          %v626 = vpack.c.b16 %v614, %v613
          %v627 = vpack.c.b16 %v616, %v615
          %v628 = vpack.c.b16 %v618, %v617
          %v629 = vpack.c.b16 %v620, %v619
          %v630 = vpack.c.b16 %v622, %v621
          %639 = vmatprep.subr.bf16.mxu0 0
          %640 = vmatpush1.bf16.msra.mxu0 %v630
          %641 = vmatprep.subr.bf16.mxu0 0
          %642 = vmatpush1.bf16.msra.mxu0 %v629
          %643 = vmatprep.subr.bf16.mxu0 0
          %644 = vmatpush1.bf16.msra.mxu0 %v628
          %645 = vmatprep.subr.bf16.mxu0 0
          %646 = vmatpush1.bf16.msra.mxu0 %v627
          %647 = vmatprep.subr.bf16.mxu0 0
          %648 = vmatpush1.bf16.msra.mxu0 %v626
          %649 = vmatprep.subr.bf16.mxu0 0
          %650 = vmatpush1.bf16.msra.mxu0 %v625
          %651 = vmatprep.subr.bf16.mxu0 0
          %652 = vmatpush1.bf16.msra.mxu0 %v624
          %653 = vmatprep.subr.bf16.mxu0 0
          %654 = vmatpush1.bf16.msra.mxu0 %v623
          %655 = vmatprep.subr.bf16.mxu0 0
          %656 = vmatpush2.bf16.msra.mxu0 0
          %657 = vmatprep.subr.bf16.mxu0 0
          %658 = vmatpush2.bf16.msra.mxu0 0
          %659 = vmatprep.subr.bf16.mxu0 0
          %660 = vmatpush2.bf16.msra.mxu0 0
          %661 = vmatprep.subr.bf16.mxu0 0
          %662 = vmatpush2.bf16.msra.mxu0 0
          %663 = vmatprep.subr.bf16.mxu0 0
          %664 = vmatpush2.bf16.msra.mxu0 0
          %665 = vmatprep.subr.bf16.mxu0 0
          %666 = vmatpush2.bf16.msra.mxu0 0
          %667 = vmatprep.subr.bf16.mxu0 0
          %668 = vmatpush2.bf16.msra.mxu0 0
          %669 = vmatprep.subr.bf16.mxu0 0
          %670 = vmatpush2.bf16.msra.mxu0 0
          %671 = vmatprep.mubr.bf16.mxu0 0
          %672 = vmatmul.mubr.bf16.gmra.mxu0 %v575
          %v673 = vpop.f32.mrf.mxu0
          %v674 = vadd.f32 0.0, %v673
          %v675 = vpop.f32.mrf.mxu0
          %v676 = vpop.f32.mrf.mxu0
          %v677 = vadd.f32 0.0, %v676
          %v678 = vpop.f32.mrf.mxu0
          %679 = vmatprep.mubr.bf16.mxu0 0
          %680 = vmatmul.mubr.bf16.gmra.mxu0 %v576
          %v681 = vpop.f32.mrf.mxu0
          %v682 = vadd.f32 0.0, %v681
          %v683 = vpop.f32.mrf.mxu0
          %v684 = vpop.f32.mrf.mxu0
          %v685 = vadd.f32 0.0, %v684
          %v686 = vpop.f32.mrf.mxu0
          %687 = vmatprep.mubr.bf16.mxu0 0
          %688 = vmatmul.mubr.bf16.gmra.mxu0 %v577
          %v689 = vpop.f32.mrf.mxu0
          %v690 = vadd.f32 0.0, %v689
          %v691 = vpop.f32.mrf.mxu0
          %v692 = vpop.f32.mrf.mxu0
          %v693 = vadd.f32 0.0, %v692
          %v694 = vpop.f32.mrf.mxu0
          %695 = vmatprep.mubr.bf16.mxu0 0
          %696 = vmatmul.mubr.bf16.gmra.mxu0 %v578
          %v697 = vpop.f32.mrf.mxu0
          %v698 = vadd.f32 0.0, %v697
          %v699 = vpop.f32.mrf.mxu0
          %v700 = vpop.f32.mrf.mxu0
          %v701 = vadd.f32 0.0, %v700
          %v702 = vpop.f32.mrf.mxu0
          %703 = vmatprep.mubr.bf16.mxu0 0
          %704 = vmatmul.mubr.bf16.gmra.mxu0 %v579
          %v705 = vpop.f32.mrf.mxu0
          %v706 = vadd.f32 0.0, %v705
          %v707 = vpop.f32.mrf.mxu0
          %v708 = vpop.f32.mrf.mxu0
          %v709 = vadd.f32 0.0, %v708
          %v710 = vpop.f32.mrf.mxu0
          %711 = vmatprep.mubr.bf16.mxu0 0
          %712 = vmatmul.mubr.bf16.gmra.mxu0 %v580
          %v713 = vpop.f32.mrf.mxu0
          %v714 = vadd.f32 0.0, %v713
          %v715 = vpop.f32.mrf.mxu0
          %v716 = vpop.f32.mrf.mxu0
          %v717 = vadd.f32 0.0, %v716
          %v718 = vpop.f32.mrf.mxu0
          %719 = vmatprep.mubr.bf16.mxu0 0
          %720 = vmatmul.mubr.bf16.gmra.mxu0 %v581
          %v721 = vpop.f32.mrf.mxu0
          %v722 = vadd.f32 0.0, %v721
          %v723 = vpop.f32.mrf.mxu0
          %v724 = vpop.f32.mrf.mxu0
          %v725 = vadd.f32 0.0, %v724
          %v726 = vpop.f32.mrf.mxu0
          %727 = vmatprep.mubr.bf16.mxu0 0
          %728 = vmatmul.mubr.bf16.gmra.mxu0 %v582
          %v729 = vpop.f32.mrf.mxu0
          %v730 = vadd.f32 0.0, %v729
          %v731 = vpop.f32.mrf.mxu0
          %v732 = vpop.f32.mrf.mxu0
          %v733 = vadd.f32 0.0, %v732
          %v734 = vpop.f32.mrf.mxu0
          %735 = vdwg.mxu0
          %s736 = scalar_lea.vmem %s2, %s502
          %v737 = vld [vmem:[%s736] sm:$0xff]
          %v738 = vld [vmem:[%s736 + $0x8] sm:$0xff]
          %v739 = vld [vmem:[%s736 + $0x10] sm:$0xff]
          %v740 = vld [vmem:[%s736 + $0x18] sm:$0xff]
          %v741 = vld [vmem:[%s736 + $0x20] sm:$0xff]
          %v742 = vld [vmem:[%s736 + $0x28] sm:$0xff]
          %v743 = vld [vmem:[%s736 + $0x30] sm:$0xff]
          %v744 = vld [vmem:[%s736 + $0x38] sm:$0xff]
          %v745 = vld [vmem:[%s736 + $0x40] sm:$0xff]
          %v746 = vld [vmem:[%s736 + $0x48] sm:$0xff]
          %v747 = vld [vmem:[%s736 + $0x50] sm:$0xff]
          %v748 = vld [vmem:[%s736 + $0x58] sm:$0xff]
          %v749 = vld [vmem:[%s736 + $0x60] sm:$0xff]
          %v750 = vld [vmem:[%s736 + $0x68] sm:$0xff]
          %v751 = vld [vmem:[%s736 + $0x70] sm:$0xff]
          %v752 = vld [vmem:[%s736 + $0x78] sm:$0xff]
          %754 = vset.pattern.permute.xlu0 0
          %755 = vperm.xlu0 %754, %v737
          %v756 = vpop.permute.xlu0 %755
          %759 = vset.pattern.permute.xlu0 0
          %760 = vperm.xlu0 %759, %v738
          %v761 = vpop.permute.xlu0 %760
          %764 = vset.pattern.permute.xlu0 0
          %765 = vperm.xlu0 %764, %v739
          %v766 = vpop.permute.xlu0 %765
          %769 = vset.pattern.permute.xlu0 0
          %770 = vperm.xlu0 %769, %v740
          %v771 = vpop.permute.xlu0 %770
          %774 = vset.pattern.permute.xlu0 0
          %775 = vperm.xlu0 %774, %v741
          %v776 = vpop.permute.xlu0 %775
          %779 = vset.pattern.permute.xlu0 0
          %780 = vperm.xlu0 %779, %v742
          %v781 = vpop.permute.xlu0 %780
          %784 = vset.pattern.permute.xlu0 0
          %785 = vperm.xlu0 %784, %v743
          %v786 = vpop.permute.xlu0 %785
          %789 = vset.pattern.permute.xlu0 0
          %790 = vperm.xlu0 %789, %v744
          %v791 = vpop.permute.xlu0 %790
          %794 = vset.pattern.permute.xlu0 0
          %795 = vperm.xlu0 %794, %v745
          %v796 = vpop.permute.xlu0 %795
          %799 = vset.pattern.permute.xlu0 0
          %800 = vperm.xlu0 %799, %v746
          %v801 = vpop.permute.xlu0 %800
          %804 = vset.pattern.permute.xlu0 0
          %805 = vperm.xlu0 %804, %v747
          %v806 = vpop.permute.xlu0 %805
          %809 = vset.pattern.permute.xlu0 0
          %810 = vperm.xlu0 %809, %v748
          %v811 = vpop.permute.xlu0 %810
          %814 = vset.pattern.permute.xlu0 0
          %815 = vperm.xlu0 %814, %v749
          %v816 = vpop.permute.xlu0 %815
          %819 = vset.pattern.permute.xlu0 0
          %820 = vperm.xlu0 %819, %v750
          %v821 = vpop.permute.xlu0 %820
          %824 = vset.pattern.permute.xlu0 0
          %825 = vperm.xlu0 %824, %v751
          %v826 = vpop.permute.xlu0 %825
          %829 = vset.pattern.permute.xlu0 0
          %830 = vperm.xlu0 %829, %v752
          %v831 = vpop.permute.xlu0 %830
          %v833 = vmul.f32 %v674, %v756
          %v834 = vmul.f32 %v677, %v761
          %v835 = vmul.f32 %v682, %v766
          %v836 = vmul.f32 %v685, %v771
          %v837 = vmul.f32 %v690, %v776
          %v838 = vmul.f32 %v693, %v781
          %v839 = vmul.f32 %v698, %v786
          %v840 = vmul.f32 %v701, %v791
          %v841 = vmul.f32 %v706, %v796
          %v842 = vmul.f32 %v709, %v801
          %v843 = vmul.f32 %v714, %v806
          %v844 = vmul.f32 %v717, %v811
          %v845 = vmul.f32 %v722, %v816
          %v846 = vmul.f32 %v725, %v821
          %v847 = vmul.f32 %v730, %v826
          %v848 = vmul.f32 %v733, %v831
          %v849 = vpack.c.bf16 %v834, %v833
          %v850 = vpack.c.bf16 %v836, %v835
          %v851 = vpack.c.bf16 %v838, %v837
          %v852 = vpack.c.bf16 %v840, %v839
          %v853 = vpack.c.bf16 %v842, %v841
          %v854 = vpack.c.bf16 %v844, %v843
          %v855 = vpack.c.bf16 %v846, %v845
          %v856 = vpack.c.bf16 %v848, %v847
          %v865 = vunpack.c.l.b16 %v849
          %v866 = vunpack.c.h.b16 %v849
          %v867 = vunpack.c.l.b16 %v850
          %v868 = vunpack.c.h.b16 %v850
          %v869 = vunpack.c.l.b16 %v851
          %v870 = vunpack.c.h.b16 %v851
          %v871 = vunpack.c.l.b16 %v852
          %v872 = vunpack.c.h.b16 %v852
          %v873 = vunpack.c.l.b16 %v853
          %v874 = vunpack.c.h.b16 %v853
          %v875 = vunpack.c.l.b16 %v854
          %v876 = vunpack.c.h.b16 %v854
          %v877 = vunpack.c.l.b16 %v855
          %v878 = vunpack.c.h.b16 %v855
          %v879 = vunpack.c.l.b16 %v856
          %v880 = vunpack.c.h.b16 %v856
          %v881 = vpack.c.b16 %v865, %v865
          %v882 = vpack.c.b16 %v866, %v866
          %v883 = vpack.c.b16 %v867, %v867
          %v884 = vpack.c.b16 %v868, %v868
          %v885 = vpack.c.b16 %v869, %v869
          %v886 = vpack.c.b16 %v870, %v870
          %v887 = vpack.c.b16 %v871, %v871
          %v888 = vpack.c.b16 %v872, %v872
          %v889 = vpack.c.b16 %v873, %v873
          %v890 = vpack.c.b16 %v874, %v874
          %v891 = vpack.c.b16 %v875, %v875
          %v892 = vpack.c.b16 %v876, %v876
          %v893 = vpack.c.b16 %v877, %v877
          %v894 = vpack.c.b16 %v878, %v878
          %v895 = vpack.c.b16 %v879, %v879
          %v896 = vpack.c.b16 %v880, %v880
          %s913 = smul.addr %s507, 4
          %s914 = scalar_lea.vmem [#allocation2], %s913
          %915 = vst [vmem:[%s914] sm:$0xf] %v881
          %916 = vst [vmem:[%s914 + $0x4] sm:$0xf] %v882
          %917 = vst [vmem:[%s914 + $0x8] sm:$0xf] %v883
          %918 = vst [vmem:[%s914 + $0xc] sm:$0xf] %v884
          %919 = vst [vmem:[%s914 + $0x10] sm:$0xf] %v885
          %920 = vst [vmem:[%s914 + $0x14] sm:$0xf] %v886
          %921 = vst [vmem:[%s914 + $0x18] sm:$0xf] %v887
          %922 = vst [vmem:[%s914 + $0x1c] sm:$0xf] %v888
          %923 = vst [vmem:[%s914 + $0x20] sm:$0xf] %v889
          %924 = vst [vmem:[%s914 + $0x24] sm:$0xf] %v890
          %925 = vst [vmem:[%s914 + $0x28] sm:$0xf] %v891
          %926 = vst [vmem:[%s914 + $0x2c] sm:$0xf] %v892
          %927 = vst [vmem:[%s914 + $0x30] sm:$0xf] %v893
          %928 = vst [vmem:[%s914 + $0x34] sm:$0xf] %v894
          %929 = vst [vmem:[%s914 + $0x38] sm:$0xf] %v895
          %930 = vst [vmem:[%s914 + $0x3c] sm:$0xf] %v896
        $region144: #{gcn_forward.1} parent=131 // pred_fallthru
          _
        %p931 = scmp.eq.s32.totalorder %s27, 0
        // Predicated region
        $region145: #{gcn_forward.1} parent=131 // pred_check
          %p932 = pneg %p931
        $region146: #{gcn_forward.1} parent=131 // pred_check_branch
          %934 = sbr.rel (%p932) target = $region148
        $region147: #{gcn_forward.1} parent=131 // pred_region
          %935 = vst [vmem:[#allocation3] sm:$0xff] 0.0
          %936 = vst [vmem:[#allocation3 + $0x8] sm:$0xff] 0.0
          %937 = vst [vmem:[#allocation3 + $0x10] sm:$0xff] 0.0
          %938 = vst [vmem:[#allocation3 + $0x18] sm:$0xff] 0.0
          %939 = vst [vmem:[#allocation3 + $0x20] sm:$0xff] 0.0
          %940 = vst [vmem:[#allocation3 + $0x28] sm:$0xff] 0.0
          %941 = vst [vmem:[#allocation3 + $0x30] sm:$0xff] 0.0
          %942 = vst [vmem:[#allocation3 + $0x38] sm:$0xff] 0.0
          %943 = vst [vmem:[#allocation3 + $0x40] sm:$0xff] 0.0
          %944 = vst [vmem:[#allocation3 + $0x48] sm:$0xff] 0.0
          %945 = vst [vmem:[#allocation3 + $0x50] sm:$0xff] 0.0
          %946 = vst [vmem:[#allocation3 + $0x58] sm:$0xff] 0.0
          %947 = vst [vmem:[#allocation3 + $0x60] sm:$0xff] 0.0
          %948 = vst [vmem:[#allocation3 + $0x68] sm:$0xff] 0.0
          %949 = vst [vmem:[#allocation3 + $0x70] sm:$0xff] 0.0
          %950 = vst [vmem:[#allocation3 + $0x78] sm:$0xff] 0.0
        $region148: #{gcn_forward.1} parent=131 // pred_fallthru
          _
        %v951 = vld [vmem:[%s456] sm:$0xff]
        %v952 = vld [vmem:[%s456 + $0x8] sm:$0xff]
        %v953 = vld [vmem:[%s456 + $0x10] sm:$0xff]
        %v954 = vld [vmem:[%s456 + $0x18] sm:$0xff]
        %v955 = vunpack.c.l.s8.bf16 %v951
        %v956 = vunpack.c.h.s8.bf16 %v951
        %v957 = vunpack.c.l.s8.bf16 %v952
        %v958 = vunpack.c.h.s8.bf16 %v952
        %v959 = vunpack.c.l.s8.bf16 %v953
        %v960 = vunpack.c.h.s8.bf16 %v953
        %v961 = vunpack.c.l.s8.bf16 %v954
        %v962 = vunpack.c.h.s8.bf16 %v954
        %v963 = vld [vmem:[#allocation3] sm:$0xff]
        %v964 = vld [vmem:[#allocation3 + $0x8] sm:$0xff]
        %v965 = vld [vmem:[#allocation3 + $0x10] sm:$0xff]
        %v966 = vld [vmem:[#allocation3 + $0x18] sm:$0xff]
        %v967 = vld [vmem:[#allocation3 + $0x20] sm:$0xff]
        %v968 = vld [vmem:[#allocation3 + $0x28] sm:$0xff]
        %v969 = vld [vmem:[#allocation3 + $0x30] sm:$0xff]
        %v970 = vld [vmem:[#allocation3 + $0x38] sm:$0xff]
        %v971 = vld [vmem:[#allocation3 + $0x40] sm:$0xff]
        %v972 = vld [vmem:[#allocation3 + $0x48] sm:$0xff]
        %v973 = vld [vmem:[#allocation3 + $0x50] sm:$0xff]
        %v974 = vld [vmem:[#allocation3 + $0x58] sm:$0xff]
        %v975 = vld [vmem:[#allocation3 + $0x60] sm:$0xff]
        %v976 = vld [vmem:[#allocation3 + $0x68] sm:$0xff]
        %v977 = vld [vmem:[#allocation3 + $0x70] sm:$0xff]
        %v978 = vld [vmem:[#allocation3 + $0x78] sm:$0xff]
        %s979 = sshra.s32 %s502, 3
        %s980 = sand.u32 %s502, 7
        %s981 = smul.addr %s979, 4
        %s982 = scalar_lea.vmem [#allocation2], %s981
        %v983 = vld [vmem:[%s982] sm:$0xf]
        %v984 = vld [vmem:[%s982 + $0x4] sm:$0xf]
        %v985 = vld [vmem:[%s982 + $0x8] sm:$0xf]
        %v986 = vld [vmem:[%s982 + $0xc] sm:$0xf]
        %v987 = vld [vmem:[%s982 + $0x10] sm:$0xf]
        %v988 = vld [vmem:[%s982 + $0x14] sm:$0xf]
        %v989 = vld [vmem:[%s982 + $0x18] sm:$0xf]
        %v990 = vld [vmem:[%s982 + $0x1c] sm:$0xf]
        %v991 = vld [vmem:[%s982 + $0x20] sm:$0xf]
        %v992 = vld [vmem:[%s982 + $0x24] sm:$0xf]
        %v993 = vld [vmem:[%s982 + $0x28] sm:$0xf]
        %v994 = vld [vmem:[%s982 + $0x2c] sm:$0xf]
        %v995 = vld [vmem:[%s982 + $0x30] sm:$0xf]
        %v996 = vld [vmem:[%s982 + $0x34] sm:$0xf]
        %v997 = vld [vmem:[%s982 + $0x38] sm:$0xf]
        %v998 = vld [vmem:[%s982 + $0x3c] sm:$0xf]
        %v1015 = vunpack.c.l.b16 %v983
        %v1016 = vunpack.c.l.b16 %v984
        %v1017 = vunpack.c.l.b16 %v985
        %v1018 = vunpack.c.l.b16 %v986
        %v1019 = vunpack.c.l.b16 %v987
        %v1020 = vunpack.c.l.b16 %v988
        %v1021 = vunpack.c.l.b16 %v989
        %v1022 = vunpack.c.l.b16 %v990
        %v1023 = vunpack.c.l.b16 %v991
        %v1024 = vunpack.c.l.b16 %v992
        %v1025 = vunpack.c.l.b16 %v993
        %v1026 = vunpack.c.l.b16 %v994
        %v1027 = vunpack.c.l.b16 %v995
        %v1028 = vunpack.c.l.b16 %v996
        %v1029 = vunpack.c.l.b16 %v997
        %v1030 = vunpack.c.l.b16 %v998
        %v1031 = vpack.c.b16 %v1016, %v1015
        %v1032 = vpack.c.b16 %v1018, %v1017
        %v1033 = vpack.c.b16 %v1020, %v1019
        %v1034 = vpack.c.b16 %v1022, %v1021
        %v1035 = vpack.c.b16 %v1024, %v1023
        %v1036 = vpack.c.b16 %v1026, %v1025
        %v1037 = vpack.c.b16 %v1028, %v1027
        %v1038 = vpack.c.b16 %v1030, %v1029
        %1047 = vmatprep.subr.bf16.mxu0 0
        %1048 = vmatpush1.bf16.msra.mxu0 %v1038
        %1049 = vmatprep.subr.bf16.mxu0 0
        %1050 = vmatpush1.bf16.msra.mxu0 %v1037
        %1051 = vmatprep.subr.bf16.mxu0 0
        %1052 = vmatpush1.bf16.msra.mxu0 %v1036
        %1053 = vmatprep.subr.bf16.mxu0 0
        %1054 = vmatpush1.bf16.msra.mxu0 %v1035
        %1055 = vmatprep.subr.bf16.mxu0 0
        %1056 = vmatpush1.bf16.msra.mxu0 %v1034
        %1057 = vmatprep.subr.bf16.mxu0 0
        %1058 = vmatpush1.bf16.msra.mxu0 %v1033
        %1059 = vmatprep.subr.bf16.mxu0 0
        %1060 = vmatpush1.bf16.msra.mxu0 %v1032
        %1061 = vmatprep.subr.bf16.mxu0 0
        %1062 = vmatpush1.bf16.msra.mxu0 %v1031
        %1063 = vmatprep.subr.bf16.mxu0 0
        %1064 = vmatpush2.bf16.msra.mxu0 0
        %1065 = vmatprep.subr.bf16.mxu0 0
        %1066 = vmatpush2.bf16.msra.mxu0 0
        %1067 = vmatprep.subr.bf16.mxu0 0
        %1068 = vmatpush2.bf16.msra.mxu0 0
        %1069 = vmatprep.subr.bf16.mxu0 0
        %1070 = vmatpush2.bf16.msra.mxu0 0
        %1071 = vmatprep.subr.bf16.mxu0 0
        %1072 = vmatpush2.bf16.msra.mxu0 0
        %1073 = vmatprep.subr.bf16.mxu0 0
        %1074 = vmatpush2.bf16.msra.mxu0 0
        %1075 = vmatprep.subr.bf16.mxu0 0
        %1076 = vmatpush2.bf16.msra.mxu0 0
        %1077 = vmatprep.subr.bf16.mxu0 0
        %1078 = vmatpush2.bf16.msra.mxu0 0
        %1079 = vmatprep.mubr.bf16.mxu0 0
        %1080 = vmatmul.mubr.bf16.gmra.mxu0 %v955
        %v1081 = vpop.f32.mrf.mxu0
        %v1082 = vadd.f32 0.0, %v1081
        %v1083 = vpop.f32.mrf.mxu0
        %v1084 = vpop.f32.mrf.mxu0
        %v1085 = vadd.f32 0.0, %v1084
        %v1086 = vpop.f32.mrf.mxu0
        %1087 = vmatprep.mubr.bf16.mxu0 0
        %1088 = vmatmul.mubr.bf16.gmra.mxu0 %v956
        %v1089 = vpop.f32.mrf.mxu0
        %v1090 = vadd.f32 0.0, %v1089
        %v1091 = vpop.f32.mrf.mxu0
        %v1092 = vpop.f32.mrf.mxu0
        %v1093 = vadd.f32 0.0, %v1092
        %v1094 = vpop.f32.mrf.mxu0
        %1095 = vmatprep.mubr.bf16.mxu0 0
        %1096 = vmatmul.mubr.bf16.gmra.mxu0 %v957
        %v1097 = vpop.f32.mrf.mxu0
        %v1098 = vadd.f32 0.0, %v1097
        %v1099 = vpop.f32.mrf.mxu0
        %v1100 = vpop.f32.mrf.mxu0
        %v1101 = vadd.f32 0.0, %v1100
        %v1102 = vpop.f32.mrf.mxu0
        %1103 = vmatprep.mubr.bf16.mxu0 0
        %1104 = vmatmul.mubr.bf16.gmra.mxu0 %v958
        %v1105 = vpop.f32.mrf.mxu0
        %v1106 = vadd.f32 0.0, %v1105
        %v1107 = vpop.f32.mrf.mxu0
        %v1108 = vpop.f32.mrf.mxu0
        %v1109 = vadd.f32 0.0, %v1108
        %v1110 = vpop.f32.mrf.mxu0
        %1111 = vmatprep.mubr.bf16.mxu0 0
        %1112 = vmatmul.mubr.bf16.gmra.mxu0 %v959
        %v1113 = vpop.f32.mrf.mxu0
        %v1114 = vadd.f32 0.0, %v1113
        %v1115 = vpop.f32.mrf.mxu0
        %v1116 = vpop.f32.mrf.mxu0
        %v1117 = vadd.f32 0.0, %v1116
        %v1118 = vpop.f32.mrf.mxu0
        %1119 = vmatprep.mubr.bf16.mxu0 0
        %1120 = vmatmul.mubr.bf16.gmra.mxu0 %v960
        %v1121 = vpop.f32.mrf.mxu0
        %v1122 = vadd.f32 0.0, %v1121
        %v1123 = vpop.f32.mrf.mxu0
        %v1124 = vpop.f32.mrf.mxu0
        %v1125 = vadd.f32 0.0, %v1124
        %v1126 = vpop.f32.mrf.mxu0
        %1127 = vmatprep.mubr.bf16.mxu0 0
        %1128 = vmatmul.mubr.bf16.gmra.mxu0 %v961
        %v1129 = vpop.f32.mrf.mxu0
        %v1130 = vadd.f32 0.0, %v1129
        %v1131 = vpop.f32.mrf.mxu0
        %v1132 = vpop.f32.mrf.mxu0
        %v1133 = vadd.f32 0.0, %v1132
        %v1134 = vpop.f32.mrf.mxu0
        %1135 = vmatprep.mubr.bf16.mxu0 0
        %1136 = vmatmul.mubr.bf16.gmra.mxu0 %v962
        %v1137 = vpop.f32.mrf.mxu0
        %v1138 = vadd.f32 0.0, %v1137
        %v1139 = vpop.f32.mrf.mxu0
        %v1140 = vpop.f32.mrf.mxu0
        %v1141 = vadd.f32 0.0, %v1140
        %v1142 = vpop.f32.mrf.mxu0
        %1143 = vdwg.mxu0
        %v1144 = vadd.f32 %v963, %v1082
        %v1145 = vadd.f32 %v964, %v1085
        %v1146 = vadd.f32 %v965, %v1090
        %v1147 = vadd.f32 %v966, %v1093
        %v1148 = vadd.f32 %v967, %v1098
        %v1149 = vadd.f32 %v968, %v1101
        %v1150 = vadd.f32 %v969, %v1106
        %v1151 = vadd.f32 %v970, %v1109
        %v1152 = vadd.f32 %v971, %v1114
        %v1153 = vadd.f32 %v972, %v1117
        %v1154 = vadd.f32 %v973, %v1122
        %v1155 = vadd.f32 %v974, %v1125
        %v1156 = vadd.f32 %v975, %v1130
        %v1157 = vadd.f32 %v976, %v1133
        %v1158 = vadd.f32 %v977, %v1138
        %v1159 = vadd.f32 %v978, %v1141
        %1160 = vst [vmem:[#allocation3] sm:$0xff] %v1144
        %1161 = vst [vmem:[#allocation3 + $0x8] sm:$0xff] %v1145
        %1162 = vst [vmem:[#allocation3 + $0x10] sm:$0xff] %v1146
        %1163 = vst [vmem:[#allocation3 + $0x18] sm:$0xff] %v1147
        %1164 = vst [vmem:[#allocation3 + $0x20] sm:$0xff] %v1148
        %1165 = vst [vmem:[#allocation3 + $0x28] sm:$0xff] %v1149
        %1166 = vst [vmem:[#allocation3 + $0x30] sm:$0xff] %v1150
        %1167 = vst [vmem:[#allocation3 + $0x38] sm:$0xff] %v1151
        %1168 = vst [vmem:[#allocation3 + $0x40] sm:$0xff] %v1152
        %1169 = vst [vmem:[#allocation3 + $0x48] sm:$0xff] %v1153
        %1170 = vst [vmem:[#allocation3 + $0x50] sm:$0xff] %v1154
        %1171 = vst [vmem:[#allocation3 + $0x58] sm:$0xff] %v1155
        %1172 = vst [vmem:[#allocation3 + $0x60] sm:$0xff] %v1156
        %1173 = vst [vmem:[#allocation3 + $0x68] sm:$0xff] %v1157
        %1174 = vst [vmem:[#allocation3 + $0x70] sm:$0xff] %v1158
        %1175 = vst [vmem:[#allocation3 + $0x78] sm:$0xff] %v1159
        %p1176 = scmp.eq.s32.totalorder %s27, 2
        // Predicated region
        $region149: #{gcn_forward.1} parent=131 // pred_check
          %p1177 = pneg %p1176
        $region150: #{gcn_forward.1} parent=131 // pred_check_branch
          %1179 = sbr.rel (%p1177) target = $region152
        $region151: #{gcn_forward.1} parent=131 // pred_region
          %v1180 = vld [vmem:[#allocation3] sm:$0xff]
          %v1181 = vld [vmem:[#allocation3 + $0x8] sm:$0xff]
          %v1182 = vld [vmem:[#allocation3 + $0x10] sm:$0xff]
          %v1183 = vld [vmem:[#allocation3 + $0x18] sm:$0xff]
          %v1184 = vld [vmem:[#allocation3 + $0x20] sm:$0xff]
          %v1185 = vld [vmem:[#allocation3 + $0x28] sm:$0xff]
          %v1186 = vld [vmem:[#allocation3 + $0x30] sm:$0xff]
          %v1187 = vld [vmem:[#allocation3 + $0x38] sm:$0xff]
          %v1188 = vld [vmem:[#allocation3 + $0x40] sm:$0xff]
          %v1189 = vld [vmem:[#allocation3 + $0x48] sm:$0xff]
          %v1190 = vld [vmem:[#allocation3 + $0x50] sm:$0xff]
          %v1191 = vld [vmem:[#allocation3 + $0x58] sm:$0xff]
          %v1192 = vld [vmem:[#allocation3 + $0x60] sm:$0xff]
          %v1193 = vld [vmem:[#allocation3 + $0x68] sm:$0xff]
          %v1194 = vld [vmem:[#allocation3 + $0x70] sm:$0xff]
          %v1195 = vld [vmem:[#allocation3 + $0x78] sm:$0xff]
          %s1196 = scalar_lea.vmem %s5, %s501
          %v1197 = vld [vmem:[%s1196] sm:$0xff]
          %v1198 = vld [vmem:[%s1196 + $0x8] sm:$0xff]
          %v1199 = vld [vmem:[%s1196 + $0x10] sm:$0xff]
          %v1200 = vld [vmem:[%s1196 + $0x18] sm:$0xff]
          %v1201 = vld [vmem:[%s1196 + $0x20] sm:$0xff]
          %v1202 = vld [vmem:[%s1196 + $0x28] sm:$0xff]
          %v1203 = vld [vmem:[%s1196 + $0x30] sm:$0xff]
          %v1204 = vld [vmem:[%s1196 + $0x38] sm:$0xff]
          %v1205 = vld [vmem:[%s1196 + $0x40] sm:$0xff]
          %v1206 = vld [vmem:[%s1196 + $0x48] sm:$0xff]
          %v1207 = vld [vmem:[%s1196 + $0x50] sm:$0xff]
          %v1208 = vld [vmem:[%s1196 + $0x58] sm:$0xff]
          %v1209 = vld [vmem:[%s1196 + $0x60] sm:$0xff]
          %v1210 = vld [vmem:[%s1196 + $0x68] sm:$0xff]
          %v1211 = vld [vmem:[%s1196 + $0x70] sm:$0xff]
          %v1212 = vld [vmem:[%s1196 + $0x78] sm:$0xff]
          %1214 = vset.pattern.permute.xlu0 0
          %1215 = vperm.xlu0 %1214, %v1197
          %v1216 = vpop.permute.xlu0 %1215
          %1219 = vset.pattern.permute.xlu0 0
          %1220 = vperm.xlu0 %1219, %v1198
          %v1221 = vpop.permute.xlu0 %1220
          %1224 = vset.pattern.permute.xlu0 0
          %1225 = vperm.xlu0 %1224, %v1199
          %v1226 = vpop.permute.xlu0 %1225
          %1229 = vset.pattern.permute.xlu0 0
          %1230 = vperm.xlu0 %1229, %v1200
          %v1231 = vpop.permute.xlu0 %1230
          %1234 = vset.pattern.permute.xlu0 0
          %1235 = vperm.xlu0 %1234, %v1201
          %v1236 = vpop.permute.xlu0 %1235
          %1239 = vset.pattern.permute.xlu0 0
          %1240 = vperm.xlu0 %1239, %v1202
          %v1241 = vpop.permute.xlu0 %1240
          %1244 = vset.pattern.permute.xlu0 0
          %1245 = vperm.xlu0 %1244, %v1203
          %v1246 = vpop.permute.xlu0 %1245
          %1249 = vset.pattern.permute.xlu0 0
          %1250 = vperm.xlu0 %1249, %v1204
          %v1251 = vpop.permute.xlu0 %1250
          %1254 = vset.pattern.permute.xlu0 0
          %1255 = vperm.xlu0 %1254, %v1205
          %v1256 = vpop.permute.xlu0 %1255
          %1259 = vset.pattern.permute.xlu0 0
          %1260 = vperm.xlu0 %1259, %v1206
          %v1261 = vpop.permute.xlu0 %1260
          %1264 = vset.pattern.permute.xlu0 0
          %1265 = vperm.xlu0 %1264, %v1207
          %v1266 = vpop.permute.xlu0 %1265
          %1269 = vset.pattern.permute.xlu0 0
          %1270 = vperm.xlu0 %1269, %v1208
          %v1271 = vpop.permute.xlu0 %1270
          %1274 = vset.pattern.permute.xlu0 0
          %1275 = vperm.xlu0 %1274, %v1209
          %v1276 = vpop.permute.xlu0 %1275
          %1279 = vset.pattern.permute.xlu0 0
          %1280 = vperm.xlu0 %1279, %v1210
          %v1281 = vpop.permute.xlu0 %1280
          %1284 = vset.pattern.permute.xlu0 0
          %1285 = vperm.xlu0 %1284, %v1211
          %v1286 = vpop.permute.xlu0 %1285
          %1289 = vset.pattern.permute.xlu0 0
          %1290 = vperm.xlu0 %1289, %v1212
          %v1291 = vpop.permute.xlu0 %1290
          %v1293 = vmul.f32 %v1180, %v1216
          %v1294 = vmul.f32 %v1181, %v1221
          %v1295 = vmul.f32 %v1182, %v1226
          %v1296 = vmul.f32 %v1183, %v1231
          %v1297 = vmul.f32 %v1184, %v1236
          %v1298 = vmul.f32 %v1185, %v1241
          %v1299 = vmul.f32 %v1186, %v1246
          %v1300 = vmul.f32 %v1187, %v1251
          %v1301 = vmul.f32 %v1188, %v1256
          %v1302 = vmul.f32 %v1189, %v1261
          %v1303 = vmul.f32 %v1190, %v1266
          %v1304 = vmul.f32 %v1191, %v1271
          %v1305 = vmul.f32 %v1192, %v1276
          %v1306 = vmul.f32 %v1193, %v1281
          %v1307 = vmul.f32 %v1194, %v1286
          %v1308 = vmul.f32 %v1195, %v1291
          %v1309 = vld [vmem:[%s4] sm:$0x1]
          %v1311 = vlaneseq
          %v1312 = vshrl.u32 %v1311, 7
          %v1313 = vsub.s32 0, %v1312
          %v1314 = vrot.slane %v1309, %v1313
          %v1316 = vadd.f32 %v1293, %v1314
          %v1317 = vadd.f32 %v1294, %v1314
          %v1318 = vadd.f32 %v1295, %v1314
          %v1319 = vadd.f32 %v1296, %v1314
          %v1320 = vadd.f32 %v1297, %v1314
          %v1321 = vadd.f32 %v1298, %v1314
          %v1322 = vadd.f32 %v1299, %v1314
          %v1323 = vadd.f32 %v1300, %v1314
          %v1324 = vadd.f32 %v1301, %v1314
          %v1325 = vadd.f32 %v1302, %v1314
          %v1326 = vadd.f32 %v1303, %v1314
          %v1327 = vadd.f32 %v1304, %v1314
          %v1328 = vadd.f32 %v1305, %v1314
          %v1329 = vadd.f32 %v1306, %v1314
          %v1330 = vadd.f32 %v1307, %v1314
          %v1331 = vadd.f32 %v1308, %v1314
          %v1332 = vmax.f32 %v1316, 0.0
          %v1333 = vmax.f32 %v1317, 0.0
          %v1334 = vmax.f32 %v1318, 0.0
          %v1335 = vmax.f32 %v1319, 0.0
          %v1336 = vmax.f32 %v1320, 0.0
          %v1337 = vmax.f32 %v1321, 0.0
          %v1338 = vmax.f32 %v1322, 0.0
          %v1339 = vmax.f32 %v1323, 0.0
          %v1340 = vmax.f32 %v1324, 0.0
          %v1341 = vmax.f32 %v1325, 0.0
          %v1342 = vmax.f32 %v1326, 0.0
          %v1343 = vmax.f32 %v1327, 0.0
          %v1344 = vmax.f32 %v1328, 0.0
          %v1345 = vmax.f32 %v1329, 0.0
          %v1346 = vmax.f32 %v1330, 0.0
          %v1347 = vmax.f32 %v1331, 0.0
          %v1348 = vpack.c.bf16 %v1333, %v1332
          %v1349 = vpack.c.bf16 %v1335, %v1334
          %v1350 = vpack.c.bf16 %v1337, %v1336
          %v1351 = vpack.c.bf16 %v1339, %v1338
          %v1352 = vpack.c.bf16 %v1341, %v1340
          %v1353 = vpack.c.bf16 %v1343, %v1342
          %v1354 = vpack.c.bf16 %v1345, %v1344
          %v1355 = vpack.c.bf16 %v1347, %v1346
          %v1356 = vld [vmem:[%s8] sm:$0xf]
          %v1357 = vld [vmem:[%s8 + $0x4] sm:$0xf]
          %v1358 = vld [vmem:[%s8 + $0x8] sm:$0xf]
          %v1359 = vld [vmem:[%s8 + $0xc] sm:$0xf]
          %v1360 = vld [vmem:[%s8 + $0x10] sm:$0xf]
          %v1361 = vld [vmem:[%s8 + $0x14] sm:$0xf]
          %v1362 = vld [vmem:[%s8 + $0x18] sm:$0xf]
          %v1363 = vld [vmem:[%s8 + $0x1c] sm:$0xf]
          %v1364 = vld [vmem:[%s8 + $0x20] sm:$0xf]
          %v1365 = vld [vmem:[%s8 + $0x24] sm:$0xf]
          %v1366 = vld [vmem:[%s8 + $0x28] sm:$0xf]
          %v1367 = vld [vmem:[%s8 + $0x2c] sm:$0xf]
          %v1368 = vld [vmem:[%s8 + $0x30] sm:$0xf]
          %v1369 = vld [vmem:[%s8 + $0x34] sm:$0xf]
          %v1370 = vld [vmem:[%s8 + $0x38] sm:$0xf]
          %v1371 = vld [vmem:[%s8 + $0x3c] sm:$0xf]
          %v1388 = vunpack.c.l.b16 %v1356
          %v1389 = vunpack.c.l.b16 %v1357
          %v1390 = vunpack.c.l.b16 %v1358
          %v1391 = vunpack.c.l.b16 %v1359
          %v1392 = vunpack.c.l.b16 %v1360
          %v1393 = vunpack.c.l.b16 %v1361
          %v1394 = vunpack.c.l.b16 %v1362
          %v1395 = vunpack.c.l.b16 %v1363
          %v1396 = vunpack.c.l.b16 %v1364
          %v1397 = vunpack.c.l.b16 %v1365
          %v1398 = vunpack.c.l.b16 %v1366
          %v1399 = vunpack.c.l.b16 %v1367
          %v1400 = vunpack.c.l.b16 %v1368
          %v1401 = vunpack.c.l.b16 %v1369
          %v1402 = vunpack.c.l.b16 %v1370
          %v1403 = vunpack.c.l.b16 %v1371
          %v1404 = vpack.c.b16 %v1389, %v1388
          %v1405 = vpack.c.b16 %v1391, %v1390
          %v1406 = vpack.c.b16 %v1393, %v1392
          %v1407 = vpack.c.b16 %v1395, %v1394
          %v1408 = vpack.c.b16 %v1397, %v1396
          %v1409 = vpack.c.b16 %v1399, %v1398
          %v1410 = vpack.c.b16 %v1401, %v1400
          %v1411 = vpack.c.b16 %v1403, %v1402
          %1420 = vmatprep.subr.bf16.mxu0 0
          %1421 = vmatpush1.bf16.msra.mxu0 %v1411
          %1422 = vmatprep.subr.bf16.mxu0 0
          %1423 = vmatpush1.bf16.msra.mxu0 %v1410
          %1424 = vmatprep.subr.bf16.mxu0 0
          %1425 = vmatpush1.bf16.msra.mxu0 %v1409
          %1426 = vmatprep.subr.bf16.mxu0 0
          %1427 = vmatpush1.bf16.msra.mxu0 %v1408
          %1428 = vmatprep.subr.bf16.mxu0 0
          %1429 = vmatpush1.bf16.msra.mxu0 %v1407
          %1430 = vmatprep.subr.bf16.mxu0 0
          %1431 = vmatpush1.bf16.msra.mxu0 %v1406
          %1432 = vmatprep.subr.bf16.mxu0 0
          %1433 = vmatpush1.bf16.msra.mxu0 %v1405
          %1434 = vmatprep.subr.bf16.mxu0 0
          %1435 = vmatpush1.bf16.msra.mxu0 %v1404
          %1436 = vmatprep.subr.bf16.mxu0 0
          %1437 = vmatpush2.bf16.msra.mxu0 0
          %1438 = vmatprep.subr.bf16.mxu0 0
          %1439 = vmatpush2.bf16.msra.mxu0 0
          %1440 = vmatprep.subr.bf16.mxu0 0
          %1441 = vmatpush2.bf16.msra.mxu0 0
          %1442 = vmatprep.subr.bf16.mxu0 0
          %1443 = vmatpush2.bf16.msra.mxu0 0
          %1444 = vmatprep.subr.bf16.mxu0 0
          %1445 = vmatpush2.bf16.msra.mxu0 0
          %1446 = vmatprep.subr.bf16.mxu0 0
          %1447 = vmatpush2.bf16.msra.mxu0 0
          %1448 = vmatprep.subr.bf16.mxu0 0
          %1449 = vmatpush2.bf16.msra.mxu0 0
          %1450 = vmatprep.subr.bf16.mxu0 0
          %1451 = vmatpush2.bf16.msra.mxu0 0
          %1452 = vmatprep.mubr.bf16.mxu0 0
          %1453 = vmatmul.mubr.bf16.gmra.mxu0 %v1348
          %v1454 = vpop.f32.mrf.mxu0
          %v1455 = vadd.f32 0.0, %v1454
          %v1456 = vpop.f32.mrf.mxu0
          %v1457 = vpop.f32.mrf.mxu0
          %v1458 = vadd.f32 0.0, %v1457
          %v1459 = vpop.f32.mrf.mxu0
          %1460 = vmatprep.mubr.bf16.mxu0 0
          %1461 = vmatmul.mubr.bf16.gmra.mxu0 %v1349
          %v1462 = vpop.f32.mrf.mxu0
          %v1463 = vadd.f32 0.0, %v1462
          %v1464 = vpop.f32.mrf.mxu0
          %v1465 = vpop.f32.mrf.mxu0
          %v1466 = vadd.f32 0.0, %v1465
          %v1467 = vpop.f32.mrf.mxu0
          %1468 = vmatprep.mubr.bf16.mxu0 0
          %1469 = vmatmul.mubr.bf16.gmra.mxu0 %v1350
          %v1470 = vpop.f32.mrf.mxu0
          %v1471 = vadd.f32 0.0, %v1470
          %v1472 = vpop.f32.mrf.mxu0
          %v1473 = vpop.f32.mrf.mxu0
          %v1474 = vadd.f32 0.0, %v1473
          %v1475 = vpop.f32.mrf.mxu0
          %1476 = vmatprep.mubr.bf16.mxu0 0
          %1477 = vmatmul.mubr.bf16.gmra.mxu0 %v1351
          %v1478 = vpop.f32.mrf.mxu0
          %v1479 = vadd.f32 0.0, %v1478
          %v1480 = vpop.f32.mrf.mxu0
          %v1481 = vpop.f32.mrf.mxu0
          %v1482 = vadd.f32 0.0, %v1481
          %v1483 = vpop.f32.mrf.mxu0
          %1484 = vmatprep.mubr.bf16.mxu0 0
          %1485 = vmatmul.mubr.bf16.gmra.mxu0 %v1352
          %v1486 = vpop.f32.mrf.mxu0
          %v1487 = vadd.f32 0.0, %v1486
          %v1488 = vpop.f32.mrf.mxu0
          %v1489 = vpop.f32.mrf.mxu0
          %v1490 = vadd.f32 0.0, %v1489
          %v1491 = vpop.f32.mrf.mxu0
          %1492 = vmatprep.mubr.bf16.mxu0 0
          %1493 = vmatmul.mubr.bf16.gmra.mxu0 %v1353
          %v1494 = vpop.f32.mrf.mxu0
          %v1495 = vadd.f32 0.0, %v1494
          %v1496 = vpop.f32.mrf.mxu0
          %v1497 = vpop.f32.mrf.mxu0
          %v1498 = vadd.f32 0.0, %v1497
          %v1499 = vpop.f32.mrf.mxu0
          %1500 = vmatprep.mubr.bf16.mxu0 0
          %1501 = vmatmul.mubr.bf16.gmra.mxu0 %v1354
          %v1502 = vpop.f32.mrf.mxu0
          %v1503 = vadd.f32 0.0, %v1502
          %v1504 = vpop.f32.mrf.mxu0
          %v1505 = vpop.f32.mrf.mxu0
          %v1506 = vadd.f32 0.0, %v1505
          %v1507 = vpop.f32.mrf.mxu0
          %1508 = vmatprep.mubr.bf16.mxu0 0
          %1509 = vmatmul.mubr.bf16.gmra.mxu0 %v1355
          %v1510 = vpop.f32.mrf.mxu0
          %v1511 = vadd.f32 0.0, %v1510
          %v1512 = vpop.f32.mrf.mxu0
          %v1513 = vpop.f32.mrf.mxu0
          %v1514 = vadd.f32 0.0, %v1513
          %v1515 = vpop.f32.mrf.mxu0
          %1516 = vdwg.mxu0
          %s1517 = scalar_lea.vmem %s7, %s501
          %v1518 = vld [vmem:[%s1517] sm:$0xff]
          %v1519 = vld [vmem:[%s1517 + $0x8] sm:$0xff]
          %v1520 = vld [vmem:[%s1517 + $0x10] sm:$0xff]
          %v1521 = vld [vmem:[%s1517 + $0x18] sm:$0xff]
          %v1522 = vld [vmem:[%s1517 + $0x20] sm:$0xff]
          %v1523 = vld [vmem:[%s1517 + $0x28] sm:$0xff]
          %v1524 = vld [vmem:[%s1517 + $0x30] sm:$0xff]
          %v1525 = vld [vmem:[%s1517 + $0x38] sm:$0xff]
          %v1526 = vld [vmem:[%s1517 + $0x40] sm:$0xff]
          %v1527 = vld [vmem:[%s1517 + $0x48] sm:$0xff]
          %v1528 = vld [vmem:[%s1517 + $0x50] sm:$0xff]
          %v1529 = vld [vmem:[%s1517 + $0x58] sm:$0xff]
          %v1530 = vld [vmem:[%s1517 + $0x60] sm:$0xff]
          %v1531 = vld [vmem:[%s1517 + $0x68] sm:$0xff]
          %v1532 = vld [vmem:[%s1517 + $0x70] sm:$0xff]
          %v1533 = vld [vmem:[%s1517 + $0x78] sm:$0xff]
          %1535 = vset.pattern.permute.xlu0 0
          %1536 = vperm.xlu0 %1535, %v1518
          %v1537 = vpop.permute.xlu0 %1536
          %1540 = vset.pattern.permute.xlu0 0
          %1541 = vperm.xlu0 %1540, %v1519
          %v1542 = vpop.permute.xlu0 %1541
          %1545 = vset.pattern.permute.xlu0 0
          %1546 = vperm.xlu0 %1545, %v1520
          %v1547 = vpop.permute.xlu0 %1546
          %1550 = vset.pattern.permute.xlu0 0
          %1551 = vperm.xlu0 %1550, %v1521
          %v1552 = vpop.permute.xlu0 %1551
          %1555 = vset.pattern.permute.xlu0 0
          %1556 = vperm.xlu0 %1555, %v1522
          %v1557 = vpop.permute.xlu0 %1556
          %1560 = vset.pattern.permute.xlu0 0
          %1561 = vperm.xlu0 %1560, %v1523
          %v1562 = vpop.permute.xlu0 %1561
          %1565 = vset.pattern.permute.xlu0 0
          %1566 = vperm.xlu0 %1565, %v1524
          %v1567 = vpop.permute.xlu0 %1566
          %1570 = vset.pattern.permute.xlu0 0
          %1571 = vperm.xlu0 %1570, %v1525
          %v1572 = vpop.permute.xlu0 %1571
          %1575 = vset.pattern.permute.xlu0 0
          %1576 = vperm.xlu0 %1575, %v1526
          %v1577 = vpop.permute.xlu0 %1576
          %1580 = vset.pattern.permute.xlu0 0
          %1581 = vperm.xlu0 %1580, %v1527
          %v1582 = vpop.permute.xlu0 %1581
          %1585 = vset.pattern.permute.xlu0 0
          %1586 = vperm.xlu0 %1585, %v1528
          %v1587 = vpop.permute.xlu0 %1586
          %1590 = vset.pattern.permute.xlu0 0
          %1591 = vperm.xlu0 %1590, %v1529
          %v1592 = vpop.permute.xlu0 %1591
          %1595 = vset.pattern.permute.xlu0 0
          %1596 = vperm.xlu0 %1595, %v1530
          %v1597 = vpop.permute.xlu0 %1596
          %1600 = vset.pattern.permute.xlu0 0
          %1601 = vperm.xlu0 %1600, %v1531
          %v1602 = vpop.permute.xlu0 %1601
          %1605 = vset.pattern.permute.xlu0 0
          %1606 = vperm.xlu0 %1605, %v1532
          %v1607 = vpop.permute.xlu0 %1606
          %1610 = vset.pattern.permute.xlu0 0
          %1611 = vperm.xlu0 %1610, %v1533
          %v1612 = vpop.permute.xlu0 %1611
          %v1614 = vmul.f32 %v1455, %v1537
          %v1615 = vmul.f32 %v1458, %v1542
          %v1616 = vmul.f32 %v1463, %v1547
          %v1617 = vmul.f32 %v1466, %v1552
          %v1618 = vmul.f32 %v1471, %v1557
          %v1619 = vmul.f32 %v1474, %v1562
          %v1620 = vmul.f32 %v1479, %v1567
          %v1621 = vmul.f32 %v1482, %v1572
          %v1622 = vmul.f32 %v1487, %v1577
          %v1623 = vmul.f32 %v1490, %v1582
          %v1624 = vmul.f32 %v1495, %v1587
          %v1625 = vmul.f32 %v1498, %v1592
          %v1626 = vmul.f32 %v1503, %v1597
          %v1627 = vmul.f32 %v1506, %v1602
          %v1628 = vmul.f32 %v1511, %v1607
          %v1629 = vmul.f32 %v1514, %v1612
          %v1630 = vpack.c.bf16 %v1615, %v1614
          %v1631 = vpack.c.bf16 %v1617, %v1616
          %v1632 = vpack.c.bf16 %v1619, %v1618
          %v1633 = vpack.c.bf16 %v1621, %v1620
          %v1634 = vpack.c.bf16 %v1623, %v1622
          %v1635 = vpack.c.bf16 %v1625, %v1624
          %v1636 = vpack.c.bf16 %v1627, %v1626
          %v1637 = vpack.c.bf16 %v1629, %v1628
          %v1638 = vld [vmem:[%s463] sm:$0xff]
          %v1639 = vld [vmem:[%s463 + $0x8] sm:$0xff]
          %v1640 = vld [vmem:[%s463 + $0x10] sm:$0xff]
          %v1641 = vunpack.c.l.s8.bf16 %v1638
          %v1642 = vunpack.c.h.s8.bf16 %v1638
          %v1643 = vunpack.c.l.s8.bf16 %v1639
          %v1644 = vunpack.c.h.s8.bf16 %v1639
          %v1645 = vunpack.c.l.s8.bf16 %v1640
          %v1646 = vunpack.c.h.s8.bf16 %v1640
          %1647 = vmatprep.subr.bf16.mxu0 0
          %1648 = vmatpush1.bf16.msra.mxu0 %v1637
          %1649 = vmatprep.subr.bf16.mxu0 0
          %1650 = vmatpush1.bf16.msra.mxu0 %v1636
          %1651 = vmatprep.subr.bf16.mxu0 0
          %1652 = vmatpush1.bf16.msra.mxu0 %v1635
          %1653 = vmatprep.subr.bf16.mxu0 0
          %1654 = vmatpush1.bf16.msra.mxu0 %v1634
          %1655 = vmatprep.subr.bf16.mxu0 0
          %1656 = vmatpush1.bf16.msra.mxu0 %v1633
          %1657 = vmatprep.subr.bf16.mxu0 0
          %1658 = vmatpush1.bf16.msra.mxu0 %v1632
          %1659 = vmatprep.subr.bf16.mxu0 0
          %1660 = vmatpush1.bf16.msra.mxu0 %v1631
          %1661 = vmatprep.subr.bf16.mxu0 0
          %1662 = vmatpush1.bf16.msra.mxu0 %v1630
          %1663 = vmatprep.subr.bf16.mxu0 0
          %1664 = vmatpush2.bf16.msra.mxu0 0
          %1665 = vmatprep.subr.bf16.mxu0 0
          %1666 = vmatpush2.bf16.msra.mxu0 0
          %1667 = vmatprep.subr.bf16.mxu0 0
          %1668 = vmatpush2.bf16.msra.mxu0 0
          %1669 = vmatprep.subr.bf16.mxu0 0
          %1670 = vmatpush2.bf16.msra.mxu0 0
          %1671 = vmatprep.subr.bf16.mxu0 0
          %1672 = vmatpush2.bf16.msra.mxu0 0
          %1673 = vmatprep.subr.bf16.mxu0 0
          %1674 = vmatpush2.bf16.msra.mxu0 0
          %1675 = vmatprep.subr.bf16.mxu0 0
          %1676 = vmatpush2.bf16.msra.mxu0 0
          %1677 = vmatprep.subr.bf16.mxu0 0
          %1678 = vmatpush2.bf16.msra.mxu0 0
          %1679 = vmatprep.mubr.bf16.mxu0 0
          %1680 = vmatmul.mubr.bf16.gmra.mxu0 %v1641
          %v1681 = vpop.f32.mrf.mxu0
          %v1682 = vadd.f32 0.0, %v1681
          %v1683 = vpop.f32.mrf.mxu0
          %v1684 = vpop.f32.mrf.mxu0
          %v1685 = vadd.f32 0.0, %v1684
          %v1686 = vpop.f32.mrf.mxu0
          %1687 = vmatprep.mubr.bf16.mxu0 0
          %1688 = vmatmul.mubr.bf16.gmra.mxu0 %v1642
          %v1689 = vpop.f32.mrf.mxu0
          %v1690 = vadd.f32 0.0, %v1689
          %v1691 = vpop.f32.mrf.mxu0
          %v1692 = vpop.f32.mrf.mxu0
          %v1693 = vadd.f32 0.0, %v1692
          %v1694 = vpop.f32.mrf.mxu0
          %1695 = vmatprep.mubr.bf16.mxu0 0
          %1696 = vmatmul.mubr.bf16.gmra.mxu0 %v1643
          %v1697 = vpop.f32.mrf.mxu0
          %v1698 = vadd.f32 0.0, %v1697
          %v1699 = vpop.f32.mrf.mxu0
          %v1700 = vpop.f32.mrf.mxu0
          %v1701 = vadd.f32 0.0, %v1700
          %v1702 = vpop.f32.mrf.mxu0
          %1703 = vmatprep.mubr.bf16.mxu0 0
          %1704 = vmatmul.mubr.bf16.gmra.mxu0 %v1644
          %v1705 = vpop.f32.mrf.mxu0
          %v1706 = vadd.f32 0.0, %v1705
          %v1707 = vpop.f32.mrf.mxu0
          %v1708 = vpop.f32.mrf.mxu0
          %v1709 = vadd.f32 0.0, %v1708
          %v1710 = vpop.f32.mrf.mxu0
          %1711 = vmatprep.mubr.bf16.mxu0 0
          %1712 = vmatmul.mubr.bf16.gmra.mxu0 %v1645
          %v1713 = vpop.f32.mrf.mxu0
          %v1714 = vadd.f32 0.0, %v1713
          %v1715 = vpop.f32.mrf.mxu0
          %v1716 = vpop.f32.mrf.mxu0
          %v1717 = vadd.f32 0.0, %v1716
          %v1718 = vpop.f32.mrf.mxu0
          %1719 = vmatprep.mubr.bf16.mxu0 0
          %1720 = vmatmul.mubr.bf16.gmra.mxu0 %v1646
          %v1721 = vpop.f32.mrf.mxu0
          %v1722 = vadd.f32 0.0, %v1721
          %v1723 = vpop.f32.mrf.mxu0
          %v1724 = vpop.f32.mrf.mxu0
          %v1725 = vadd.f32 0.0, %v1724
          %v1726 = vpop.f32.mrf.mxu0
          %1727 = vdwg.mxu0
          // Predicated region
          $region153: #{gcn_forward.1} parent=151 // pred_check
            %p1728 = pneg %p503
          $region154: #{gcn_forward.1} parent=151 // pred_check_branch
            %1730 = sbr.rel (%p1728) target = $region156
          $region155: #{gcn_forward.1} parent=151 // pred_region
            %1731 = vst [vmem:[#allocation4] sm:$0xff] 0.0
            %1732 = vst [vmem:[#allocation4 + $0x8] sm:$0xff] 0.0
            %1733 = vst [vmem:[#allocation4 + $0x10] sm:$0xff] 0.0
            %1734 = vst [vmem:[#allocation4 + $0x18] sm:$0xff] 0.0
            %1735 = vst [vmem:[#allocation4 + $0x20] sm:$0xff] 0.0
            %1736 = vst [vmem:[#allocation4 + $0x28] sm:$0xff] 0.0
            %1737 = vst [vmem:[#allocation4 + $0x30] sm:$0xff] 0.0
            %1738 = vst [vmem:[#allocation4 + $0x38] sm:$0xff] 0.0
            %1739 = vst [vmem:[#allocation4 + $0x40] sm:$0xff] 0.0
            %1740 = vst [vmem:[#allocation4 + $0x48] sm:$0xff] 0.0
            %1741 = vst [vmem:[#allocation4 + $0x50] sm:$0xff] 0.0
            %1742 = vst [vmem:[#allocation4 + $0x58] sm:$0xff] 0.0
          $region156: #{gcn_forward.1} parent=151 // pred_fallthru
            _
          %v1743 = vld [vmem:[#allocation4] sm:$0xff]
          %v1744 = vld [vmem:[#allocation4 + $0x8] sm:$0xff]
          %v1745 = vld [vmem:[#allocation4 + $0x10] sm:$0xff]
          %v1746 = vld [vmem:[#allocation4 + $0x18] sm:$0xff]
          %v1747 = vld [vmem:[#allocation4 + $0x20] sm:$0xff]
          %v1748 = vld [vmem:[#allocation4 + $0x28] sm:$0xff]
          %v1749 = vld [vmem:[#allocation4 + $0x30] sm:$0xff]
          %v1750 = vld [vmem:[#allocation4 + $0x38] sm:$0xff]
          %v1751 = vld [vmem:[#allocation4 + $0x40] sm:$0xff]
          %v1752 = vld [vmem:[#allocation4 + $0x48] sm:$0xff]
          %v1753 = vld [vmem:[#allocation4 + $0x50] sm:$0xff]
          %v1754 = vld [vmem:[#allocation4 + $0x58] sm:$0xff]
          %v1755 = vadd.f32 %v1743, %v1682
          %v1756 = vadd.f32 %v1744, %v1685
          %v1757 = vadd.f32 %v1745, %v1690
          %v1758 = vadd.f32 %v1746, %v1693
          %v1759 = vadd.f32 %v1747, %v1698
          %v1760 = vadd.f32 %v1748, %v1701
          %v1761 = vadd.f32 %v1749, %v1706
          %v1762 = vadd.f32 %v1750, %v1709
          %v1763 = vadd.f32 %v1751, %v1714
          %v1764 = vadd.f32 %v1752, %v1717
          %v1765 = vadd.f32 %v1753, %v1722
          %v1766 = vadd.f32 %v1754, %v1725
          %1767 = vst [vmem:[#allocation4] sm:$0xff] %v1755
          %1768 = vst [vmem:[#allocation4 + $0x8] sm:$0xff] %v1756
          %1769 = vst [vmem:[#allocation4 + $0x10] sm:$0xff] %v1757
          %1770 = vst [vmem:[#allocation4 + $0x18] sm:$0xff] %v1758
          %1771 = vst [vmem:[#allocation4 + $0x20] sm:$0xff] %v1759
          %1772 = vst [vmem:[#allocation4 + $0x28] sm:$0xff] %v1760
          %1773 = vst [vmem:[#allocation4 + $0x30] sm:$0xff] %v1761
          %1774 = vst [vmem:[#allocation4 + $0x38] sm:$0xff] %v1762
          %1775 = vst [vmem:[#allocation4 + $0x40] sm:$0xff] %v1763
          %1776 = vst [vmem:[#allocation4 + $0x48] sm:$0xff] %v1764
          %1777 = vst [vmem:[#allocation4 + $0x50] sm:$0xff] %v1765
          %1778 = vst [vmem:[#allocation4 + $0x58] sm:$0xff] %v1766
          %p1779 = scmp.eq.s32.totalorder %s26, 1
          // Predicated region
          $region157: #{gcn_forward.1} parent=151 // pred_check
            %p1780 = pneg %p1779
          $region158: #{gcn_forward.1} parent=151 // pred_check_branch
            %1782 = sbr.rel (%p1780) target = $region160
          $region159: #{gcn_forward.1} parent=151 // pred_region
            %v1783 = vld [vmem:[#allocation4] sm:$0xff]
            %v1784 = vld [vmem:[#allocation4 + $0x8] sm:$0xff]
            %v1785 = vld [vmem:[#allocation4 + $0x10] sm:$0xff]
            %v1786 = vld [vmem:[#allocation4 + $0x18] sm:$0xff]
            %v1787 = vld [vmem:[#allocation4 + $0x20] sm:$0xff]
            %v1788 = vld [vmem:[#allocation4 + $0x28] sm:$0xff]
            %v1789 = vld [vmem:[#allocation4 + $0x30] sm:$0xff]
            %v1790 = vld [vmem:[#allocation4 + $0x38] sm:$0xff]
            %v1791 = vld [vmem:[#allocation4 + $0x40] sm:$0xff]
            %v1792 = vld [vmem:[#allocation4 + $0x48] sm:$0xff]
            %v1793 = vld [vmem:[#allocation4 + $0x50] sm:$0xff]
            %v1794 = vld [vmem:[#allocation4 + $0x58] sm:$0xff]
            %v1795 = vld [vmem:[%s10] sm:$0xff]
            %v1796 = vld [vmem:[%s10 + $0x8] sm:$0xff]
            %v1797 = vld [vmem:[%s10 + $0x10] sm:$0xff]
            %v1798 = vld [vmem:[%s10 + $0x18] sm:$0xff]
            %v1799 = vld [vmem:[%s10 + $0x20] sm:$0xff]
            %v1800 = vld [vmem:[%s10 + $0x28] sm:$0xff]
            %v1801 = vld [vmem:[%s10 + $0x30] sm:$0xff]
            %v1802 = vld [vmem:[%s10 + $0x38] sm:$0xff]
            %v1803 = vld [vmem:[%s10 + $0x40] sm:$0xff]
            %v1804 = vld [vmem:[%s10 + $0x48] sm:$0xff]
            %v1805 = vld [vmem:[%s10 + $0x50] sm:$0xff]
            %v1806 = vld [vmem:[%s10 + $0x58] sm:$0xff]
            %1808 = vset.pattern.permute.xlu0 0
            %1809 = vperm.xlu0 %1808, %v1795
            %v1810 = vpop.permute.xlu0 %1809
            %1813 = vset.pattern.permute.xlu0 0
            %1814 = vperm.xlu0 %1813, %v1796
            %v1815 = vpop.permute.xlu0 %1814
            %1818 = vset.pattern.permute.xlu0 0
            %1819 = vperm.xlu0 %1818, %v1797
            %v1820 = vpop.permute.xlu0 %1819
            %1823 = vset.pattern.permute.xlu0 0
            %1824 = vperm.xlu0 %1823, %v1798
            %v1825 = vpop.permute.xlu0 %1824
            %1828 = vset.pattern.permute.xlu0 0
            %1829 = vperm.xlu0 %1828, %v1799
            %v1830 = vpop.permute.xlu0 %1829
            %1833 = vset.pattern.permute.xlu0 0
            %1834 = vperm.xlu0 %1833, %v1800
            %v1835 = vpop.permute.xlu0 %1834
            %1838 = vset.pattern.permute.xlu0 0
            %1839 = vperm.xlu0 %1838, %v1801
            %v1840 = vpop.permute.xlu0 %1839
            %1843 = vset.pattern.permute.xlu0 0
            %1844 = vperm.xlu0 %1843, %v1802
            %v1845 = vpop.permute.xlu0 %1844
            %1848 = vset.pattern.permute.xlu0 0
            %1849 = vperm.xlu0 %1848, %v1803
            %v1850 = vpop.permute.xlu0 %1849
            %1853 = vset.pattern.permute.xlu0 0
            %1854 = vperm.xlu0 %1853, %v1804
            %v1855 = vpop.permute.xlu0 %1854
            %1858 = vset.pattern.permute.xlu0 0
            %1859 = vperm.xlu0 %1858, %v1805
            %v1860 = vpop.permute.xlu0 %1859
            %1863 = vset.pattern.permute.xlu0 0
            %1864 = vperm.xlu0 %1863, %v1806
            %v1865 = vpop.permute.xlu0 %1864
            %v1867 = vmul.f32 %v1783, %v1810
            %v1868 = vmul.f32 %v1784, %v1815
            %v1869 = vmul.f32 %v1785, %v1820
            %v1870 = vmul.f32 %v1786, %v1825
            %v1871 = vmul.f32 %v1787, %v1830
            %v1872 = vmul.f32 %v1788, %v1835
            %v1873 = vmul.f32 %v1789, %v1840
            %v1874 = vmul.f32 %v1790, %v1845
            %v1875 = vmul.f32 %v1791, %v1850
            %v1876 = vmul.f32 %v1792, %v1855
            %v1877 = vmul.f32 %v1793, %v1860
            %v1878 = vmul.f32 %v1794, %v1865
            %v1879 = vld [vmem:[%s9] sm:$0x1]
            %v1881 = vlaneseq
            %v1882 = vshrl.u32 %v1881, 7
            %v1883 = vsub.s32 0, %v1882
            %v1884 = vrot.slane %v1879, %v1883
            %v1886 = vadd.f32 %v1867, %v1884
            %v1887 = vadd.f32 %v1868, %v1884
            %v1888 = vadd.f32 %v1869, %v1884
            %v1889 = vadd.f32 %v1870, %v1884
            %v1890 = vadd.f32 %v1871, %v1884
            %v1891 = vadd.f32 %v1872, %v1884
            %v1892 = vadd.f32 %v1873, %v1884
            %v1893 = vadd.f32 %v1874, %v1884
            %v1894 = vadd.f32 %v1875, %v1884
            %v1895 = vadd.f32 %v1876, %v1884
            %v1896 = vadd.f32 %v1877, %v1884
            %v1897 = vadd.f32 %v1878, %v1884
            %v1898 = vpack.c.bf16 %v1887, %v1886
            %v1899 = vpack.c.bf16 %v1889, %v1888
            %v1900 = vpack.c.bf16 %v1891, %v1890
            %v1901 = vpack.c.bf16 %v1893, %v1892
            %v1902 = vpack.c.bf16 %v1895, %v1894
            %v1903 = vpack.c.bf16 %v1897, %v1896
            %v1910 = vunpack.c.l.b16 %v1898
            %v1911 = vunpack.c.h.b16 %v1898
            %v1912 = vunpack.c.l.b16 %v1899
            %v1913 = vunpack.c.h.b16 %v1899
            %v1914 = vunpack.c.l.b16 %v1900
            %v1915 = vunpack.c.h.b16 %v1900
            %v1916 = vunpack.c.l.b16 %v1901
            %v1917 = vunpack.c.h.b16 %v1901
            %v1918 = vunpack.c.l.b16 %v1902
            %v1919 = vunpack.c.h.b16 %v1902
            %v1920 = vunpack.c.l.b16 %v1903
            %v1921 = vunpack.c.h.b16 %v1903
            %v1922 = vpack.c.b16 %v1910, %v1910
            %v1923 = vpack.c.b16 %v1911, %v1911
            %v1924 = vpack.c.b16 %v1912, %v1912
            %v1925 = vpack.c.b16 %v1913, %v1913
            %v1926 = vpack.c.b16 %v1914, %v1914
            %v1927 = vpack.c.b16 %v1915, %v1915
            %v1928 = vpack.c.b16 %v1916, %v1916
            %v1929 = vpack.c.b16 %v1917, %v1917
            %v1930 = vpack.c.b16 %v1918, %v1918
            %v1931 = vpack.c.b16 %v1919, %v1919
            %v1932 = vpack.c.b16 %v1920, %v1920
            %v1933 = vpack.c.b16 %v1921, %v1921
            %1946 = vst [vmem:[%s11] sm:$0xf] %v1922
            %1947 = vst [vmem:[%s11 + $0x4] sm:$0xf] %v1923
            %1948 = vst [vmem:[%s11 + $0x8] sm:$0xf] %v1924
            %1949 = vst [vmem:[%s11 + $0xc] sm:$0xf] %v1925
            %1950 = vst [vmem:[%s11 + $0x10] sm:$0xf] %v1926
            %1951 = vst [vmem:[%s11 + $0x14] sm:$0xf] %v1927
            %1952 = vst [vmem:[%s11 + $0x18] sm:$0xf] %v1928
            %1953 = vst [vmem:[%s11 + $0x1c] sm:$0xf] %v1929
            %1954 = vst [vmem:[%s11 + $0x20] sm:$0xf] %v1930
            %1955 = vst [vmem:[%s11 + $0x24] sm:$0xf] %v1931
            %1956 = vst [vmem:[%s11 + $0x28] sm:$0xf] %v1932
            %1957 = vst [vmem:[%s11 + $0x2c] sm:$0xf] %v1933
          $region160: #{gcn_forward.1} parent=151 // pred_fallthru
            _
        $region152: #{gcn_forward.1} parent=131 // pred_fallthru
          _
        // Predicated region
        $region161: #{gcn_forward.1} parent=131 // pred_check
          %p1958 = pneg %p290
        $region162: #{gcn_forward.1} parent=131 // pred_check_branch
          %1960 = sbr.rel (%p1958) target = $region164
        $region163: #{gcn_forward.1} parent=131 // pred_region
          _
        $region164: #{gcn_forward.1} parent=131 // pred_fallthru
          _
        // Predicated region
        $region165: #{gcn_forward.1} parent=131 // pred_check
          %p1961 = pneg %p290
        $region166: #{gcn_forward.1} parent=131 // pred_check_branch
          %1963 = sbr.rel (%p1961) target = $region168
        $region167: #{gcn_forward.1} parent=131 // pred_region
          _
        $region168: #{gcn_forward.1} parent=131 // pred_fallthru
          _
      $region132: #{gcn_forward.1} parent=5 // pred_fallthru
        _
      %p1964 = scmp.le.s32.totalorder 2, %s17
      // Predicated region
      $region169: #{gcn_forward.1} parent=5 // pred_check
        %p1965 = pneg %p1964
      $region170: #{gcn_forward.1} parent=5 // pred_check_branch
        %1967 = sbr.rel (%p1965) target = $region172
      $region171: #{gcn_forward.1} parent=5 // pred_region
        %s1968 = ssub.s32 %s17, 2
      $region172: #{gcn_forward.1} parent=5 // pred_fallthru
        _
    $region6: #{gcn_forward.1} parent=1 // loop_footer
      %s21 = sadd.s32 1, %s17
    $region7: #{gcn_forward.1} parent=1 // loop_footer_branch
      %16 = sbr.rel target = $region3
    $region8: #{gcn_forward.1} parent=1 // loop_exit
      _

</llo_original>
